<compile_context>
chip_gen: v7x
topology: tpu7x:2x2x1
jax: 0.10.0
libtpu: 0.0.40
codegen_flags: <defaults>
</compile_context>

<pallas_src>
import math

import jax
import jax.numpy as jnp
from jax import lax
from jax.experimental import pallas as pl
from jax.experimental.pallas import tpu as pltpu

IMAGENET_DEFAULT_MEAN = (0.485, 0.456, 0.406)
IMAGENET_DEFAULT_STD = (0.229, 0.224, 0.225)


# ---------------------------------------------------------------------------
# Pallas kernel: one (image, view) per grid step, fully fused.
# ---------------------------------------------------------------------------
def _views_kernel(params_ref, x_ref, wct_ref, wr_ref, g_ref,
                  invstd_ref, bias_ref, o_ref, img_ref):
    # params (SMEM f32[B*2*16]), per (b, v):
    #   0: brightness  1: contrast
    #   2..10: 3x3 channel-mix (saturation o hue o random-grayscale)
    #   11: blur flag  12: solarize flag  13..15: pad
    b = pl.program_id(0)
    v = pl.program_id(1)
    S = o_ref.shape[1]
    H = x_ref.shape[0] // 3

    base = (b * 2 + v) * 16
    bright = params_ref[base + 0]
    cont = params_ref[base + 1]
    m = [params_ref[base + 2 + i] for i in range(9)]
    blur_flag = params_ref[base + 11]
    sol_flag = params_ref[base + 12]

    # --- RandomResizedCrop (bicubic) + horizontal flip (folded into wct).
    # Column resize: one matmul for all 3 channels (channels stacked on rows).
    t = jnp.dot(x_ref[...], wct_ref[...],
                preferred_element_type=jnp.float32)            # (3H, S) f32
    tb = t.astype(jnp.bfloat16)
    wr = wr_ref[...]                                           # (S, H) bf16
    # Row resize: dense per-channel dots (no block-diag zero blocks).
    chans = [jnp.dot(wr, tb[c * H:(c + 1) * H, :],
                     preferred_element_type=jnp.float32) for c in range(3)]
    y = jnp.concatenate(chans, axis=0)                         # (3S, S) f32
    y = jnp.clip(y, 0.0, 1.0)                                  # bicubic overshoot

    # --- ColorJitter
    # TODO(synk): torchvision applies brightness/contrast/saturation/hue in a
    # random permutation; a fixed order is used here.
    y = jnp.clip(y * bright, 0.0, 1.0)                         # brightness

    r = y[0:S, :]
    gch = y[S:2 * S, :]
    bch = y[2 * S:3 * S, :]
    gray = 0.2989 * r + 0.587 * gch + 0.114 * bch
    mean_gray = jnp.sum(gray) * (1.0 / float(S * S))
    y = jnp.clip(cont * y + (1.0 - cont) * mean_gray, 0.0, 1.0)  # contrast

    # --- saturation + hue rotation (YIQ) + RandomGrayscale folded into one
    # precomputed 3x3 channel mix.
    # TODO(synk): torchvision adjust_hue uses an exact HSV round-trip and
    # clamps after saturation; YIQ rotation is used and the intermediate
    # post-saturation clamp is folded away.
    r = y[0:S, :]
    gch = y[S:2 * S, :]
    bch = y[2 * S:3 * S, :]
    y = jnp.concatenate([
        jnp.clip(m[0] * r + m[1] * gch + m[2] * bch, 0.0, 1.0),
        jnp.clip(m[3] * r + m[4] * gch + m[5] * bch, 0.0, 1.0),
        jnp.clip(m[6] * r + m[7] * gch + m[8] * bch, 0.0, 1.0),
    ], axis=0)                                                 # (3S, S) f32

    # --- GaussianBlur: only pay the matmuls when the flag is drawn; the
    # blurred slab is handed back through img_ref and selected below.
    @pl.when(blur_flag > 0.5)
    def _():
        g = g_ref[...]                                         # (S, S) bf16
        yb = y.astype(jnp.bfloat16)
        # column (horizontal) blur: y @ G^T, all 3 channels in one dot
        tcol = lax.dot_general(yb, g, (((1,), (1,)), ((), ())),
                               preferred_element_type=jnp.float32
                               ).astype(jnp.bfloat16)          # (3S, S)
        # row (vertical) blur: per-channel G @ (.)
        img_ref[...] = jnp.concatenate(
            [jnp.dot(g, tcol[c * S:(c + 1) * S, :],
                     preferred_element_type=jnp.float32) for c in range(3)],
            axis=0)

    y = jnp.where(blur_flag > 0.5, img_ref[...], y)

    # --- Solarization (PIL threshold 128 -> 128/255) + Normalize, fused store.
    y = jnp.where(jnp.logical_and(sol_flag > 0.5, y >= 128.0 / 255.0),
                  1.0 - y, y)
    o_ref[...] = y * invstd_ref[...] + bias_ref[...]


# ---------------------------------------------------------------------------
# Glue: deterministic sampling of augmentation parameters + weight matrices.
# ---------------------------------------------------------------------------
def _cubic_weight(t):
    # Keys bicubic kernel, a = -0.5 (PIL / torchvision BICUBIC)
    a = -0.5
    at = jnp.abs(t)
    w1 = (a + 2.0) * at ** 3 - (a + 3.0) * at ** 2 + 1.0
    w2 = a * at ** 3 - 5.0 * a * at ** 2 + 8.0 * a * at - 4.0 * a
    return jnp.where(at <= 1.0, w1, jnp.where(at < 2.0, w2, 0.0))


def _resize_matrix(start, length, in_size, out_size):
    # Dense (out_size, in_size) bicubic sampling matrix for crop
    # [start, start+length) resized to out_size.
    # TODO(synk): antialias=True widens the filter when downscaling; plain
    # bicubic taps are used here.
    scale = length / out_size
    t = jnp.arange(out_size, dtype=jnp.float32)
    src = start + (t + 0.5) * scale - 0.5
    base = jnp.floor(src)
    mat = jnp.zeros((out_size, in_size), jnp.float32)
    for tap in range(-1, 3):
        idx = base + tap
        w = _cubic_weight(src - idx)
        col = jnp.clip(idx, 0, in_size - 1).astype(jnp.int32)
        mat = mat + w[:, None] * jax.nn.one_hot(col, in_size, dtype=jnp.float32)
    return mat / jnp.sum(mat, axis=1, keepdims=True)


def _sample_crop(key, H, W, scale=(0.08, 1.0), ratio=(0.08, 1.0)):
    # ratio=(0.08, 1.0) matches the module's ratio=(min_ratio, 1.0).
    # TODO(synk): torchvision RandomResizedCrop retries up to 10 times then
    # falls back to center crop; a single clamped attempt is used here.
    k1, k2, k3, k4 = jax.random.split(key, 4)
    area = float(H * W)
    target_area = area * jax.random.uniform(k1, minval=scale[0], maxval=scale[1])
    log_ratio = jax.random.uniform(
        k2, minval=math.log(ratio[0]), maxval=math.log(ratio[1]))
    ar = jnp.exp(log_ratio)
    w = jnp.clip(jnp.sqrt(target_area * ar), 1.0, float(W))
    h = jnp.clip(jnp.sqrt(target_area / ar), 1.0, float(H))
    i = jax.random.uniform(k3) * (H - h)
    j = jax.random.uniform(k4) * (W - w)
    return i, j, h, w


def _sample_jitter(key):
    k0, k1, k2, k3, k4 = jax.random.split(key, 5)
    apply = jax.random.uniform(k0) < 0.8
    b = jax.random.uniform(k1, minval=0.6, maxval=1.4)    # brightness 0.4
    c = jax.random.uniform(k2, minval=0.6, maxval=1.4)    # contrast 0.4
    s = jax.random.uniform(k3, minval=0.8, maxval=1.2)    # saturation 0.2
    h = jax.random.uniform(k4, minval=-0.1, maxval=0.1)   # hue 0.1
    b = jnp.where(apply, b, 1.0)
    c = jnp.where(apply, c, 1.0)
    s = jnp.where(apply, s, 1.0)
    h = jnp.where(apply, h, 0.0)
    return b, c, s, h


def _sample_gauss(key, p, size):
    # TODO(synk): PIL GaussianBlur uses a truncated kernel with edge handling;
    # an untruncated row-renormalized dense SxS Gaussian is used here.
    k1, k2 = jax.random.split(key)
    apply = jax.random.uniform(k1) < p
    sigma = jax.random.uniform(k2) * 1.9 + 0.1
    x = jnp.arange(size, dtype=jnp.float32)
    d = x[:, None] - x[None, :]
    G = jnp.exp(-0.5 * (d / sigma) ** 2)
    G = G / jnp.sum(G, axis=1, keepdims=True)
    return G, apply.astype(jnp.float32)


def _make_view_inputs(key, H, W, S, blur_p, solarize_p):
    keys = jax.random.split(key, 6)
    i, j, h, w = _sample_crop(keys[0], H, W)
    wr = _resize_matrix(i, h, H, S)                        # (S, H)
    wc = _resize_matrix(j, w, W, S)                        # (S, W)
    flip = jax.random.uniform(keys[1]) < 0.5
    wc = jnp.where(flip, wc[::-1], wc)                     # flip folded in
    b, c, s, hue = _sample_jitter(keys[2])
    gray = jax.random.uniform(keys[3]) < 0.2
    G, blur_flag = _sample_gauss(keys[4], blur_p, S)
    sol_flag = (jax.random.uniform(keys[5]) < solarize_p).astype(jnp.float32)

    # Hue rotation (YIQ), saturation blend and random grayscale folded into a
    # single 3x3 channel mix applied in-kernel.
    theta = hue * 2.0 * jnp.pi
    cth, sth = jnp.cos(theta), jnp.sin(theta)
    rgb2yiq = jnp.array([[0.299, 0.587, 0.114],
                         [0.595716, -0.274453, -0.321263],
                         [0.211456, -0.522591, 0.311135]], jnp.float32)
    yiq2rgb = jnp.array([[1.0, 0.9563, 0.6210],
                         [1.0, -0.2721, -0.6474],
                         [1.0, -1.1070, 1.7046]], jnp.float32)
    one = jnp.float32(1.0)
    zero = jnp.float32(0.0)
    rot = jnp.stack([
        jnp.stack([one, zero, zero]),
        jnp.stack([zero, cth, -sth]),
        jnp.stack([zero, sth, cth]),
    ])
    m_hue = yiq2rgb @ rot @ rgb2yiq
    luma = jnp.array([0.2989, 0.587, 0.114], jnp.float32)
    m_gray = jnp.tile(luma[None, :], (3, 1))
    eye3 = jnp.eye(3, dtype=jnp.float32)
    m_sat = s * eye3 + (1.0 - s) * m_gray                  # saturation fold
    m_mix = jnp.where(gray, m_gray, eye3) @ m_hue @ m_sat

    params = jnp.concatenate([
        jnp.stack([b, c]),
        m_mix.reshape(-1),
        jnp.stack([blur_flag, sol_flag]),
    ]).astype(jnp.float32)
    params = jnp.pad(params, (0, 3))                       # (16,)

    return (params,
            wc.T.astype(jnp.bfloat16),                     # (W, S)
            wr.astype(jnp.bfloat16),                       # (S, H)
            G.astype(jnp.bfloat16))                        # (S, S)


def _make_inputs_batched(key, B, H, W, S):
    keys = jax.random.split(key, B * 2)
    keys = keys.reshape((B, 2) + keys.shape[1:])
    blur_ps = jnp.array([1.0, 0.1], jnp.float32)           # view1 / view2
    sol_ps = jnp.array([0.0, 0.2], jnp.float32)

    def per_view(k, bp, sp):
        return _make_view_inputs(k, H, W, S, bp, sp)

    per_img = jax.vmap(per_view, in_axes=(0, 0, 0))
    per_batch = jax.vmap(per_img, in_axes=(0, None, None))
    return per_batch(keys, blur_ps, sol_ps)


def contrastive_pretext_transform(key, x, img_size=8):
    """(x1, x2): two stochastic views per image. x: (B,3,H,W) or (3,H,W) in [0,1]."""
    squeeze = x.ndim == 3
    if squeeze:
        x = x[None]
    B, C, H, W = x.shape
    S = img_size

    params, wct, wr, g = _make_inputs_batched(key, B, H, W, S)
    params_flat = params.reshape(-1)                        # SMEM scalars
    x_tall = x.astype(jnp.bfloat16).reshape(B, 3 * H, W)    # channels on rows

    mean = jnp.asarray(IMAGENET_DEFAULT_MEAN, jnp.float32)
    std = jnp.asarray(IMAGENET_DEFAULT_STD, jnp.float32)
    inv_std_col = jnp.repeat(1.0 / std, S)[:, None]         # (3S, 1)
    bias_col = jnp.repeat(-mean / std, S)[:, None]          # (3S, 1)

    sq = pl.Squeezed()
    out = pl.pallas_call(
        _views_kernel,
        out_shape=jax.ShapeDtypeStruct((B, 2, 3 * S, S), jnp.float32),
        grid=(B, 2),
        in_specs=[
            pl.BlockSpec(memory_space=pltpu.MemorySpace.SMEM),            # params
            pl.BlockSpec((sq, 3 * H, W), lambda b, v: (b, 0, 0)),         # image
            pl.BlockSpec((sq, sq, W, S), lambda b, v: (b, v, 0, 0)),      # wc^T
            pl.BlockSpec((sq, sq, S, H), lambda b, v: (b, v, 0, 0)),      # wr
            pl.BlockSpec((sq, sq, S, S), lambda b, v: (b, v, 0, 0)),      # blur G
            pl.BlockSpec((3 * S, 1), lambda b, v: (0, 0)),                # 1/std
            pl.BlockSpec((3 * S, 1), lambda b, v: (0, 0)),                # -mean/std
        ],
        out_specs=pl.BlockSpec((sq, sq, 3 * S, S), lambda b, v: (b, v, 0, 0)),
        scratch_shapes=[pltpu.VMEM((3 * S, S), jnp.float32)],
        compiler_params=pltpu.CompilerParams(
            dimension_semantics=("parallel", "arbitrary"),   # batch-parallel
            vmem_limit_bytes=32 * 1024 * 1024,
        ),
    )(params_flat, x_tall, wct, wr, g, inv_std_col, bias_col)

    views = out.reshape(B, 2, 3, S, S)
    x1, x2 = views[:, 0], views[:, 1]
    if squeeze:
        x1, x2 = x1[0], x2[0]
    return x1, x2


if __name__ == "__main__":
    key = jax.random.PRNGKey(0)
    k_img, k_aug = jax.random.split(key)
    B, H, W, S = 2, 16, 16, 8
    # small deterministic "PIL images": BCHW float32 in [0, 1]
    x = jax.random.uniform(k_img, (B, 3, H, W), dtype=jnp.float32)

    fn = jax.jit(contrastive_pretext_transform, static_argnums=(2,))
    x1, x2 = fn(k_aug, x, S)
    jax.block_until_ready((x1, x2))

    assert x1.shape == (B, 3, S, S) and x2.shape == (B, 3, S, S)
    assert x1.dtype == jnp.float32 and x2.dtype == jnp.float32
    assert bool(jnp.all(jnp.isfinite(x1))) and bool(jnp.all(jnp.isfinite(x2)))
    print("KERNEL_OK")
</pallas_src>

<mosaic_0001>
module attributes {stable_mosaic.version = 11 : i64} {
  func.func @_views_kernel(%arg0: i32, %arg1: i32, %arg2: memref<64xf32, #tpu.memory_space<smem>>, %arg3: memref<1x48x16xbf16, #tpu.memory_space<vmem>>, %arg4: memref<1x1x16x8xbf16, #tpu.memory_space<vmem>>, %arg5: memref<1x1x8x16xbf16, #tpu.memory_space<vmem>>, %arg6: memref<1x1x8x8xbf16, #tpu.memory_space<vmem>>, %arg7: memref<24x1xf32, #tpu.memory_space<vmem>>, %arg8: memref<24x1xf32, #tpu.memory_space<vmem>>, %arg9: memref<1x1x24x8xf32, #tpu.memory_space<vmem>>, %arg10: memref<24x8xf32, #tpu.memory_space<vmem>>) attributes {dimension_semantics = [#tpu.dimension_semantics<parallel>, #tpu.dimension_semantics<arbitrary>], iteration_bounds = array<i64: 2, 2>, scalar_prefetch = 0 : i64, scratch_operands = 1 : i64, tpu.core_type = #tpu.core_type<tc>, window_params = [{transform_indices = @transform_0, window_bounds = array<i64: 64>}, {transform_indices = @transform_1, window_bounds = array<i64: 1, 48, 16>}, {transform_indices = @transform_2, window_bounds = array<i64: 1, 1, 16, 8>}, {transform_indices = @transform_3, window_bounds = array<i64: 1, 1, 8, 16>}, {transform_indices = @transform_4, window_bounds = array<i64: 1, 1, 8, 8>}, {pipeline_mode = #tpu.pipeline_mode<synchronous>, transform_indices = @transform_5, window_bounds = array<i64: 24, 1>}, {pipeline_mode = #tpu.pipeline_mode<synchronous>, transform_indices = @transform_6, window_bounds = array<i64: 24, 1>}, {transform_indices = @transform_7, window_bounds = array<i64: 1, 1, 24, 8>}]} {
    %c2_i32 = arith.constant 2 : i32
    %0 = arith.muli %arg0, %c2_i32 : i32
    %1 = arith.addi %0, %arg1 : i32
    %c16_i32 = arith.constant 16 : i32
    %2 = arith.muli %1, %c16_i32 : i32
    %c0_i32 = arith.constant 0 : i32
    %3 = arith.addi %2, %c0_i32 : i32
    %4 = arith.index_cast %3 : i32 to index
    %5 = memref.load %arg2[%4] : memref<64xf32, #tpu.memory_space<smem>>
    %c1_i32 = arith.constant 1 : i32
    %6 = arith.addi %2, %c1_i32 : i32
    %7 = arith.index_cast %6 : i32 to index
    %8 = memref.load %arg2[%7] : memref<64xf32, #tpu.memory_space<smem>>
    %c2_i32_0 = arith.constant 2 : i32
    %9 = arith.addi %2, %c2_i32_0 : i32
    %c0_i32_1 = arith.constant 0 : i32
    %10 = arith.addi %9, %c0_i32_1 : i32
    %11 = arith.index_cast %10 : i32 to index
    %12 = memref.load %arg2[%11] : memref<64xf32, #tpu.memory_space<smem>>
    %c2_i32_2 = arith.constant 2 : i32
    %13 = arith.addi %2, %c2_i32_2 : i32
    %c1_i32_3 = arith.constant 1 : i32
    %14 = arith.addi %13, %c1_i32_3 : i32
    %15 = arith.index_cast %14 : i32 to index
    %16 = memref.load %arg2[%15] : memref<64xf32, #tpu.memory_space<smem>>
    %c2_i32_4 = arith.constant 2 : i32
    %17 = arith.addi %2, %c2_i32_4 : i32
    %c2_i32_5 = arith.constant 2 : i32
    %18 = arith.addi %17, %c2_i32_5 : i32
    %19 = arith.index_cast %18 : i32 to index
    %20 = memref.load %arg2[%19] : memref<64xf32, #tpu.memory_space<smem>>
    %c2_i32_6 = arith.constant 2 : i32
    %21 = arith.addi %2, %c2_i32_6 : i32
    %c3_i32 = arith.constant 3 : i32
    %22 = arith.addi %21, %c3_i32 : i32
    %23 = arith.index_cast %22 : i32 to index
    %24 = memref.load %arg2[%23] : memref<64xf32, #tpu.memory_space<smem>>
    %c2_i32_7 = arith.constant 2 : i32
    %25 = arith.addi %2, %c2_i32_7 : i32
    %c4_i32 = arith.constant 4 : i32
    %26 = arith.addi %25, %c4_i32 : i32
    %27 = arith.index_cast %26 : i32 to index
    %28 = memref.load %arg2[%27] : memref<64xf32, #tpu.memory_space<smem>>
    %c2_i32_8 = arith.constant 2 : i32
    %29 = arith.addi %2, %c2_i32_8 : i32
    %c5_i32 = arith.constant 5 : i32
    %30 = arith.addi %29, %c5_i32 : i32
    %31 = arith.index_cast %30 : i32 to index
    %32 = memref.load %arg2[%31] : memref<64xf32, #tpu.memory_space<smem>>
    %c2_i32_9 = arith.constant 2 : i32
    %33 = arith.addi %2, %c2_i32_9 : i32
    %c6_i32 = arith.constant 6 : i32
    %34 = arith.addi %33, %c6_i32 : i32
    %35 = arith.index_cast %34 : i32 to index
    %36 = memref.load %arg2[%35] : memref<64xf32, #tpu.memory_space<smem>>
    %c2_i32_10 = arith.constant 2 : i32
    %37 = arith.addi %2, %c2_i32_10 : i32
    %c7_i32 = arith.constant 7 : i32
    %38 = arith.addi %37, %c7_i32 : i32
    %39 = arith.index_cast %38 : i32 to index
    %40 = memref.load %arg2[%39] : memref<64xf32, #tpu.memory_space<smem>>
    %c2_i32_11 = arith.constant 2 : i32
    %41 = arith.addi %2, %c2_i32_11 : i32
    %c8_i32 = arith.constant 8 : i32
    %42 = arith.addi %41, %c8_i32 : i32
    %43 = arith.index_cast %42 : i32 to index
    %44 = memref.load %arg2[%43] : memref<64xf32, #tpu.memory_space<smem>>
    %c11_i32 = arith.constant 11 : i32
    %45 = arith.addi %2, %c11_i32 : i32
    %46 = arith.index_cast %45 : i32 to index
    %47 = memref.load %arg2[%46] : memref<64xf32, #tpu.memory_space<smem>>
    %c12_i32 = arith.constant 12 : i32
    %48 = arith.addi %2, %c12_i32 : i32
    %49 = arith.index_cast %48 : i32 to index
    %50 = memref.load %arg2[%49] : memref<64xf32, #tpu.memory_space<smem>>
    %c0 = arith.constant 0 : index
    %c0_12 = arith.constant 0 : index
    %c0_13 = arith.constant 0 : index
    %51 = vector.load %arg3[%c0, %c0_12, %c0_13] : memref<1x48x16xbf16, #tpu.memory_space<vmem>>, vector<1x48x16xbf16>
    %52 = vector.shape_cast %51 : vector<1x48x16xbf16> to vector<48x16xbf16>
    %c0_14 = arith.constant 0 : index
    %c0_15 = arith.constant 0 : index
    %c0_16 = arith.constant 0 : index
    %c0_17 = arith.constant 0 : index
    %53 = vector.load %arg4[%c0_14, %c0_15, %c0_16, %c0_17] : memref<1x1x16x8xbf16, #tpu.memory_space<vmem>>, vector<1x1x16x8xbf16>
    %54 = vector.shape_cast %53 : vector<1x1x16x8xbf16> to vector<16x8xbf16>
    %cst = arith.constant dense<0.000000e+00> : vector<48x8xf32>
    %55 = tpu.matmul %52, %54, %cst {dimension_numbers = #tpu.dot_dimension_numbers<[1], [0], [0], [1], [0, 0, 1, 1], [], []>} : vector<48x16xbf16>, vector<16x8xbf16>, vector<48x8xf32> -> vector<48x8xf32>
    %56 = arith.truncf %55 : vector<48x8xf32> to vector<48x8xbf16>
    %c0_18 = arith.constant 0 : index
    %c0_19 = arith.constant 0 : index
    %c0_20 = arith.constant 0 : index
    %c0_21 = arith.constant 0 : index
    %57 = vector.load %arg5[%c0_18, %c0_19, %c0_20, %c0_21] : memref<1x1x8x16xbf16, #tpu.memory_space<vmem>>, vector<1x1x8x16xbf16>
    %58 = vector.shape_cast %57 : vector<1x1x8x16xbf16> to vector<8x16xbf16>
    %59 = vector.extract_strided_slice %56 {offsets = [0, 0], sizes = [16, 8], strides = [1, 1]} : vector<48x8xbf16> to vector<16x8xbf16>
    %cst_22 = arith.constant dense<0.000000e+00> : vector<8x8xf32>
    %60 = tpu.matmul %58, %59, %cst_22 {dimension_numbers = #tpu.dot_dimension_numbers<[1], [0], [0], [1], [0, 0, 1, 1], [], []>} : vector<8x16xbf16>, vector<16x8xbf16>, vector<8x8xf32> -> vector<8x8xf32>
    %61 = vector.extract_strided_slice %56 {offsets = [16, 0], sizes = [16, 8], strides = [1, 1]} : vector<48x8xbf16> to vector<16x8xbf16>
    %cst_23 = arith.constant dense<0.000000e+00> : vector<8x8xf32>
    %62 = tpu.matmul %58, %61, %cst_23 {dimension_numbers = #tpu.dot_dimension_numbers<[1], [0], [0], [1], [0, 0, 1, 1], [], []>} : vector<8x16xbf16>, vector<16x8xbf16>, vector<8x8xf32> -> vector<8x8xf32>
    %63 = vector.extract_strided_slice %56 {offsets = [32, 0], sizes = [16, 8], strides = [1, 1]} : vector<48x8xbf16> to vector<16x8xbf16>
    %cst_24 = arith.constant dense<0.000000e+00> : vector<8x8xf32>
    %64 = tpu.matmul %58, %63, %cst_24 {dimension_numbers = #tpu.dot_dimension_numbers<[1], [0], [0], [1], [0, 0, 1, 1], [], []>} : vector<8x16xbf16>, vector<16x8xbf16>, vector<8x8xf32> -> vector<8x8xf32>
    %65 = tpu.concatenate %60, %62, %64 in 0 : vector<8x8xf32>, vector<8x8xf32>, vector<8x8xf32> -> vector<24x8xf32>
    %cst_25 = arith.constant 0.000000e+00 : f32
    %cst_26 = arith.constant 1.000000e+00 : f32
    %66 = vector.broadcast %cst_25 : f32 to vector<24x8xf32>
    %67 = arith.maximumf %66, %65 : vector<24x8xf32>
    %68 = vector.broadcast %cst_26 : f32 to vector<24x8xf32>
    %69 = arith.minimumf %68, %67 : vector<24x8xf32>
    %70 = vector.broadcast %5 : f32 to vector<24x8xf32>
    %71 = arith.mulf %69, %70 : vector<24x8xf32>
    %cst_27 = arith.constant 0.000000e+00 : f32
    %cst_28 = arith.constant 1.000000e+00 : f32
    %72 = vector.broadcast %cst_27 : f32 to vector<24x8xf32>
    %73 = arith.maximumf %72, %71 : vector<24x8xf32>
    %74 = vector.broadcast %cst_28 : f32 to vector<24x8xf32>
    %75 = arith.minimumf %74, %73 : vector<24x8xf32>
    %76 = vector.extract_strided_slice %75 {offsets = [0, 0], sizes = [8, 8], strides = [1, 1]} : vector<24x8xf32> to vector<8x8xf32>
    %77 = vector.extract_strided_slice %75 {offsets = [8, 0], sizes = [8, 8], strides = [1, 1]} : vector<24x8xf32> to vector<8x8xf32>
    %78 = vector.extract_strided_slice %75 {offsets = [16, 0], sizes = [8, 8], strides = [1, 1]} : vector<24x8xf32> to vector<8x8xf32>
    %cst_29 = arith.constant 2.989000e-01 : f32
    %79 = vector.broadcast %cst_29 : f32 to vector<8x8xf32>
    %80 = arith.mulf %79, %76 : vector<8x8xf32>
    %cst_30 = arith.constant 5.870000e-01 : f32
    %81 = vector.broadcast %cst_30 : f32 to vector<8x8xf32>
    %82 = arith.mulf %81, %77 : vector<8x8xf32>
    %83 = arith.addf %80, %82 : vector<8x8xf32>
    %cst_31 = arith.constant 1.140000e-01 : f32
    %84 = vector.broadcast %cst_31 : f32 to vector<8x8xf32>
    %85 = arith.mulf %84, %78 : vector<8x8xf32>
    %86 = arith.addf %83, %85 : vector<8x8xf32>
    %87 = vector.shape_cast %86 : vector<8x8xf32> to vector<1x8x8xf32>
    %cst_32 = arith.constant dense<0.000000e+00> : vector<1xf32>
    %88 = vector.multi_reduction <add>, %87, %cst_32 [1, 2] : vector<1x8x8xf32> to vector<1xf32>
    %89 = vector.shape_cast %88 : vector<1xf32> to vector<1x1x1xf32>
    %90 = vector.extract %89[0, 0, 0] : f32 from vector<1x1x1xf32>
    %cst_33 = arith.constant 1.562500e-02 : f32
    %91 = arith.mulf %90, %cst_33 : f32
    %92 = vector.broadcast %8 : f32 to vector<24x8xf32>
    %93 = arith.mulf %92, %75 : vector<24x8xf32>
    %cst_34 = arith.constant 1.000000e+00 : f32
    %94 = arith.subf %cst_34, %8 : f32
    %95 = arith.mulf %94, %91 : f32
    %96 = vector.broadcast %95 : f32 to vector<24x8xf32>
    %97 = arith.addf %93, %96 : vector<24x8xf32>
    %cst_35 = arith.constant 0.000000e+00 : f32
    %cst_36 = arith.constant 1.000000e+00 : f32
    %98 = vector.broadcast %cst_35 : f32 to vector<24x8xf32>
    %99 = arith.maximumf %98, %97 : vector<24x8xf32>
    %100 = vector.broadcast %cst_36 : f32 to vector<24x8xf32>
    %101 = arith.minimumf %100, %99 : vector<24x8xf32>
    %102 = vector.extract_strided_slice %101 {offsets = [0, 0], sizes = [8, 8], strides = [1, 1]} : vector<24x8xf32> to vector<8x8xf32>
    %103 = vector.extract_strided_slice %101 {offsets = [8, 0], sizes = [8, 8], strides = [1, 1]} : vector<24x8xf32> to vector<8x8xf32>
    %104 = vector.extract_strided_slice %101 {offsets = [16, 0], sizes = [8, 8], strides = [1, 1]} : vector<24x8xf32> to vector<8x8xf32>
    %105 = vector.broadcast %12 : f32 to vector<8x8xf32>
    %106 = arith.mulf %105, %102 : vector<8x8xf32>
    %107 = vector.broadcast %16 : f32 to vector<8x8xf32>
    %108 = arith.mulf %107, %103 : vector<8x8xf32>
    %109 = arith.addf %106, %108 : vector<8x8xf32>
    %110 = vector.broadcast %20 : f32 to vector<8x8xf32>
    %111 = arith.mulf %110, %104 : vector<8x8xf32>
    %112 = arith.addf %109, %111 : vector<8x8xf32>
    %cst_37 = arith.constant 0.000000e+00 : f32
    %cst_38 = arith.constant 1.000000e+00 : f32
    %113 = vector.broadcast %cst_37 : f32 to vector<8x8xf32>
    %114 = arith.maximumf %113, %112 : vector<8x8xf32>
    %115 = vector.broadcast %cst_38 : f32 to vector<8x8xf32>
    %116 = arith.minimumf %115, %114 : vector<8x8xf32>
    %117 = vector.broadcast %24 : f32 to vector<8x8xf32>
    %118 = arith.mulf %117, %102 : vector<8x8xf32>
    %119 = vector.broadcast %28 : f32 to vector<8x8xf32>
    %120 = arith.mulf %119, %103 : vector<8x8xf32>
    %121 = arith.addf %118, %120 : vector<8x8xf32>
    %122 = vector.broadcast %32 : f32 to vector<8x8xf32>
    %123 = arith.mulf %122, %104 : vector<8x8xf32>
    %124 = arith.addf %121, %123 : vector<8x8xf32>
    %cst_39 = arith.constant 0.000000e+00 : f32
    %cst_40 = arith.constant 1.000000e+00 : f32
    %125 = vector.broadcast %cst_39 : f32 to vector<8x8xf32>
    %126 = arith.maximumf %125, %124 : vector<8x8xf32>
    %127 = vector.broadcast %cst_40 : f32 to vector<8x8xf32>
    %128 = arith.minimumf %127, %126 : vector<8x8xf32>
    %129 = vector.broadcast %36 : f32 to vector<8x8xf32>
    %130 = arith.mulf %129, %102 : vector<8x8xf32>
    %131 = vector.broadcast %40 : f32 to vector<8x8xf32>
    %132 = arith.mulf %131, %103 : vector<8x8xf32>
    %133 = arith.addf %130, %132 : vector<8x8xf32>
    %134 = vector.broadcast %44 : f32 to vector<8x8xf32>
    %135 = arith.mulf %134, %104 : vector<8x8xf32>
    %136 = arith.addf %133, %135 : vector<8x8xf32>
    %cst_41 = arith.constant 0.000000e+00 : f32
    %cst_42 = arith.constant 1.000000e+00 : f32
    %137 = vector.broadcast %cst_41 : f32 to vector<8x8xf32>
    %138 = arith.maximumf %137, %136 : vector<8x8xf32>
    %139 = vector.broadcast %cst_42 : f32 to vector<8x8xf32>
    %140 = arith.minimumf %139, %138 : vector<8x8xf32>
    %141 = tpu.concatenate %116, %128, %140 in 0 : vector<8x8xf32>, vector<8x8xf32>, vector<8x8xf32> -> vector<24x8xf32>
    %cst_43 = arith.constant 5.000000e-01 : f32
    %142 = arith.cmpf ogt, %47, %cst_43 : f32
    %143 = arith.extui %142 : i1 to i32
    %c0_i32_44 = arith.constant 0 : i32
    %144 = arith.cmpi ne, %143, %c0_i32_44 : i32
    scf.if %144 {
      %c0_59 = arith.constant 0 : index
      %c0_60 = arith.constant 0 : index
      %c0_61 = arith.constant 0 : index
      %c0_62 = arith.constant 0 : index
      %165 = vector.load %arg6[%c0_59, %c0_60, %c0_61, %c0_62] : memref<1x1x8x8xbf16, #tpu.memory_space<vmem>>, vector<1x1x8x8xbf16>
      %166 = vector.shape_cast %165 : vector<1x1x8x8xbf16> to vector<8x8xbf16>
      %167 = arith.truncf %141 : vector<24x8xf32> to vector<24x8xbf16>
      %cst_63 = arith.constant dense<0.000000e+00> : vector<24x8xf32>
      %168 = tpu.matmul %167, %166, %cst_63 {dimension_numbers = #tpu.dot_dimension_numbers<[1], [1], [0], [0], [0, 0, 1, 0], [], []>} : vector<24x8xbf16>, vector<8x8xbf16>, vector<24x8xf32> -> vector<24x8xf32>
      %169 = arith.truncf %168 : vector<24x8xf32> to vector<24x8xbf16>
      %170 = vector.extract_strided_slice %169 {offsets = [0, 0], sizes = [8, 8], strides = [1, 1]} : vector<24x8xbf16> to vector<8x8xbf16>
      %cst_64 = arith.constant dense<0.000000e+00> : vector<8x8xf32>
      %171 = tpu.matmul %166, %170, %cst_64 {dimension_numbers = #tpu.dot_dimension_numbers<[1], [0], [0], [1], [0, 0, 1, 1], [], []>} : vector<8x8xbf16>, vector<8x8xbf16>, vector<8x8xf32> -> vector<8x8xf32>
      %172 = vector.extract_strided_slice %169 {offsets = [8, 0], sizes = [8, 8], strides = [1, 1]} : vector<24x8xbf16> to vector<8x8xbf16>
      %cst_65 = arith.constant dense<0.000000e+00> : vector<8x8xf32>
      %173 = tpu.matmul %166, %172, %cst_65 {dimension_numbers = #tpu.dot_dimension_numbers<[1], [0], [0], [1], [0, 0, 1, 1], [], []>} : vector<8x8xbf16>, vector<8x8xbf16>, vector<8x8xf32> -> vector<8x8xf32>
      %174 = vector.extract_strided_slice %169 {offsets = [16, 0], sizes = [8, 8], strides = [1, 1]} : vector<24x8xbf16> to vector<8x8xbf16>
      %cst_66 = arith.constant dense<0.000000e+00> : vector<8x8xf32>
      %175 = tpu.matmul %166, %174, %cst_66 {dimension_numbers = #tpu.dot_dimension_numbers<[1], [0], [0], [1], [0, 0, 1, 1], [], []>} : vector<8x8xbf16>, vector<8x8xbf16>, vector<8x8xf32> -> vector<8x8xf32>
      %176 = tpu.concatenate %171, %173, %175 in 0 : vector<8x8xf32>, vector<8x8xf32>, vector<8x8xf32> -> vector<24x8xf32>
      %c0_67 = arith.constant 0 : index
      %c0_68 = arith.constant 0 : index
      %177 = vector.load %arg10[%c0_67, %c0_68] : memref<24x8xf32, #tpu.memory_space<vmem>>, vector<24x8xf32>
      tpu.vector_store %arg10[%c0_67, %c0_68], %176 {strides = array<i32>} : memref<24x8xf32, #tpu.memory_space<vmem>>, vector<24x8xf32>,
    } else {
    }
    %cst_45 = arith.constant 5.000000e-01 : f32
    %145 = arith.cmpf ogt, %47, %cst_45 : f32
    %c0_46 = arith.constant 0 : index
    %c0_47 = arith.constant 0 : index
    %146 = vector.load %arg10[%c0_46, %c0_47] : memref<24x8xf32, #tpu.memory_space<vmem>>, vector<24x8xf32>
    %147 = arith.select %145, %146, %141 : vector<24x8xf32>
    %cst_48 = arith.constant 5.000000e-01 : f32
    %148 = arith.cmpf ogt, %50, %cst_48 : f32
    %cst_49 = arith.constant 0.501960814 : f32
    %149 = vector.broadcast %cst_49 : f32 to vector<24x8xf32>
    %150 = arith.cmpf oge, %147, %149 : vector<24x8xf32>
    %151 = vector.broadcast %148 : i1 to vector<24x8xi1>
    %152 = arith.andi %151, %150 : vector<24x8xi1>
    %cst_50 = arith.constant 1.000000e+00 : f32
    %153 = vector.broadcast %cst_50 : f32 to vector<24x8xf32>
    %154 = arith.subf %153, %147 : vector<24x8xf32>
    %155 = arith.select %152, %154, %147 : vector<24x8xi1>, vector<24x8xf32>
    %c0_51 = arith.constant 0 : index
    %c0_52 = arith.constant 0 : index
    %156 = vector.load %arg7[%c0_51, %c0_52] : memref<24x1xf32, #tpu.memory_space<vmem>>, vector<24x1xf32>
    %157 = vector.broadcast %156 : vector<24x1xf32> to vector<24x8xf32>
    %158 = arith.mulf %155, %157 : vector<24x8xf32>
    %c0_53 = arith.constant 0 : index
    %c0_54 = arith.constant 0 : index
    %159 = vector.load %arg8[%c0_53, %c0_54] : memref<24x1xf32, #tpu.memory_space<vmem>>, vector<24x1xf32>
    %160 = vector.broadcast %159 : vector<24x1xf32> to vector<24x8xf32>
    %161 = arith.addf %158, %160 : vector<24x8xf32>
    %c0_55 = arith.constant 0 : index
    %c0_56 = arith.constant 0 : index
    %c0_57 = arith.constant 0 : index
    %c0_58 = arith.constant 0 : index
    %162 = vector.load %arg9[%c0_55, %c0_56, %c0_57, %c0_58] : memref<1x1x24x8xf32, #tpu.memory_space<vmem>>, vector<1x1x24x8xf32>
    %163 = vector.shape_cast %162 : vector<1x1x24x8xf32> to vector<24x8xf32>
    %164 = vector.shape_cast %161 : vector<24x8xf32> to vector<1x1x24x8xf32>
    tpu.vector_store %arg9[%c0_55, %c0_56, %c0_57, %c0_58], %164 {strides = array<i32>} : memref<1x1x24x8xf32, #tpu.memory_space<vmem>>, vector<1x1x24x8xf32>,
    return
  }
  func.func @transform_0(%arg0: i32, %arg1: i32) -> i32 {
    %c0_i32 = arith.constant 0 : i32
    %c0_i32_0 = arith.constant 0 : i32
    return %c0_i32 : i32
  }
  func.func @transform_1(%arg0: i32, %arg1: i32) -> (i32, i32, i32) {
    %c0_i32 = arith.constant 0 : i32
    %c0_i32_0 = arith.constant 0 : i32
    %c0_i32_1 = arith.constant 0 : i32
    return %arg0, %c0_i32, %c0_i32_0 : i32, i32, i32
  }
  func.func @transform_2(%arg0: i32, %arg1: i32) -> (i32, i32, i32, i32) {
    %c0_i32 = arith.constant 0 : i32
    %c0_i32_0 = arith.constant 0 : i32
    %c0_i32_1 = arith.constant 0 : i32
    return %arg0, %arg1, %c0_i32, %c0_i32_0 : i32, i32, i32, i32
  }
  func.func @transform_3(%arg0: i32, %arg1: i32) -> (i32, i32, i32, i32) {
    %c0_i32 = arith.constant 0 : i32
    %c0_i32_0 = arith.constant 0 : i32
    %c0_i32_1 = arith.constant 0 : i32
    return %arg0, %arg1, %c0_i32, %c0_i32_0 : i32, i32, i32, i32
  }
  func.func @transform_4(%arg0: i32, %arg1: i32) -> (i32, i32, i32, i32) {
    %c0_i32 = arith.constant 0 : i32
    %c0_i32_0 = arith.constant 0 : i32
    %c0_i32_1 = arith.constant 0 : i32
    return %arg0, %arg1, %c0_i32, %c0_i32_0 : i32, i32, i32, i32
  }
  func.func @transform_5(%arg0: i32, %arg1: i32) -> (i32, i32) {
    %c0_i32 = arith.constant 0 : i32
    %c0_i32_0 = arith.constant 0 : i32
    %c0_i32_1 = arith.constant 0 : i32
    return %c0_i32, %c0_i32_0 : i32, i32
  }
  func.func @transform_6(%arg0: i32, %arg1: i32) -> (i32, i32) {
    %c0_i32 = arith.constant 0 : i32
    %c0_i32_0 = arith.constant 0 : i32
    %c0_i32_1 = arith.constant 0 : i32
    return %c0_i32, %c0_i32_0 : i32, i32
  }
  func.func @transform_7(%arg0: i32, %arg1: i32) -> (i32, i32, i32, i32) {
    %c0_i32 = arith.constant 0 : i32
    %c0_i32_0 = arith.constant 0 : i32
    %c0_i32_1 = arith.constant 0 : i32
    return %arg0, %arg1, %c0_i32, %c0_i32_0 : i32, i32, i32, i32
  }
}

</mosaic_0001>

<llo_original>
// kernel: contrastive_pretext_transform.1
$region0: #{contrastive_pretext_transform.1}
  #allocation0 [shape = 'u32[]', space=smem, size = 0x4, offset = 0x4, fixed_abs, tag = 'smem constant byte address 0x4 - core index']
  #allocation1 [shape = 'u32[144,128]{1,0:T(1,128)}', space=vmem, size = 0x12000, scoped, tag = 'internal scratch']
  #allocation2 [shape = 'f32[24,8]{1,0:T(8,128)}', space=vmem, size = 0x3000, scoped, tag = 'scratch operand']
  %s0 = inlined_call_operand.vmem [shape: f32[64], index: 0, kind: input, shape index: {}]
  %s1 = inlined_call_operand.vmem [shape: bf16[2,48,16], index: 1, kind: input, shape index: {}]
  %s2 = inlined_call_operand.vmem [shape: bf16[2,2,16,8], index: 2, kind: input, shape index: {}]
  %s3 = inlined_call_operand.vmem [shape: bf16[2,2,8,16], index: 3, kind: input, shape index: {}]
  %s4 = inlined_call_operand.vmem [shape: bf16[2,2,8,8], index: 4, kind: input, shape index: {}]
  %s5 = inlined_call_operand.vmem [shape: f32[24,1], index: 5, kind: input, shape index: {}]
  %s6 = inlined_call_operand.vmem [shape: f32[24,1], index: 6, kind: input, shape index: {}]
  %s7 = inlined_call_operand.vmem [shape: f32[2,2,24,8], index: 7, kind: output, shape index: {}]
  %s8 = sld [smem:[#allocation0]]
  $region69: #{contrastive_pretext_transform.1} parent=0
    _
  %s10 = ssub.s32 1, %s8
  %s11 = scalar_select 0, %s10, %s8
  $region1: #{contrastive_pretext_transform.1} parent=0
    #allocation3 [shape = 'u8[512]{0}', space=smem, size = 0x200, scoped, tag = 'input window, operand 0, single buffered']
    #allocation4 [shape = 's32[2]{0}', space=sflag, size = 0x8, scoped, tag = 'scoped memory for contrastive_pretext_transform.1']
    %12 = vsyncpa [#allocation4], 0
    loop: start=0, step=1, limit=6
    $region2: #{contrastive_pretext_transform.1} parent=1 // loop_pre_header
      _
    $region3: #{contrastive_pretext_transform.1} parent=1 // loop_header
      %s14 = sphi 0, %s18
      %p15 = scmp.ge.s32.totalorder %s14, 6
      %s21 = sphi 0, %s33
      %s22 = sphi 0, %s29
      %s23 = sphi 0, %s21
      %s24 = sphi 0, %s22
      %s25 = sphi 0, %s23
      %s26 = sphi 0, %s24
      %s34 = sphi 0, %s34
      %s36 = sphi 0, %s34
      %s37 = sphi 0, %s36
      %s51 = sphi 0, %s37
      %s57 = sphi 0, %s59
      %s60 = sphi 0, %s57
      %s61 = sphi 0, %s60
      %s77 = sphi 0, %s61
      %s85 = sphi 0, %s87
      %s88 = sphi 0, %s85
      %s89 = sphi 0, %s88
      %s105 = sphi 0, %s89
      %s113 = sphi 0, %s115
      %s116 = sphi 0, %s113
      %s117 = sphi 0, %s116
      %s133 = sphi 0, %s117
      %s141 = sphi 0, %s143
      %s144 = sphi 0, %s141
      %s145 = sphi 0, %s144
      %s161 = sphi 0, %s145
      %s165 = sphi 0, %s165
      %s167 = sphi 0, %s165
      %s168 = sphi 0, %s167
      %s182 = sphi 0, %s168
      %s186 = sphi 0, %s186
      %s188 = sphi 0, %s186
      %s189 = sphi 0, %s188
      %s203 = sphi 0, %s189
      %s211 = sphi 0, %s213
      %s214 = sphi 0, %s211
      %s215 = sphi 0, %s214
      %s231 = sphi 0, %s215
    $region4: #{contrastive_pretext_transform.1} parent=1 // loop_header_branch
      %17 = sbr.rel (%p15) target = $region8
    $region5: #{contrastive_pretext_transform.1} parent=1 // loop_body
      %s19 = ssub.s32 %s14, 1
      %s20 = ssub.s32 %s14, 2
      %s27 = sadd.s32 1, %s22
      %p28 = scmp.ge.s32.totalorder %s27, 2
      %s29 = scalar_select %p28, 0, %s27
      %s30 = sadd.s32 1, %s21
      %s31 = scalar_select %p28, %s30, %s21
      %p32 = scmp.ge.s32.totalorder %s31, 2
      %s33 = scalar_select %p32, 0, %s31
      %s35 = sadd.s32 %s34, 1
      %p38 = scmp.eq.s32.totalorder %s14, 3
      %p39 = scmp.ne.s32.totalorder %s34, %s36
      %p40 = scmp.eq.s32.totalorder %s14, 0
      %p41 = por %p39, %p40
      %p42 = scmp.ne.s32.totalorder %s34, %s36
      %p43 = scmp.eq.s32.totalorder %s19, 3
      %p44 = por %p42, %p43
      %p45 = scmp.ne.s32.totalorder %s36, %s37
      %p46 = scmp.eq.s32.totalorder %s19, 0
      %p47 = por %p45, %p46
      %p48 = scmp.ne.s32.totalorder %s36, %s37
      %p49 = scmp.eq.s32.totalorder %s20, 3
      %p50 = por %p48, %p49
      %p52 = scmp.ne.s32.totalorder %s37, %s51
      %p53 = scmp.eq.s32.totalorder %s20, 0
      %p54 = por %p52, %p53
      %s55 = ssub.s32 %s21, %s33
      %p56 = scmp.eq.s32.totalorder %s55, 0
      %s58 = sadd.s32 %s57, 1
      %s59 = scalar_select %p56, %s57, %s58
      %p62 = pneg %p56
      %p63 = scmp.eq.s32.totalorder %s14, 3
      %p64 = por %p62, %p63
      %p65 = scmp.ne.s32.totalorder %s57, %s60
      %p66 = scmp.eq.s32.totalorder %s14, 0
      %p67 = por %p65, %p66
      %p68 = scmp.ne.s32.totalorder %s57, %s60
      %p69 = scmp.eq.s32.totalorder %s19, 3
      %p70 = por %p68, %p69
      %p71 = scmp.ne.s32.totalorder %s60, %s61
      %p72 = scmp.eq.s32.totalorder %s19, 0
      %p73 = por %p71, %p72
      %p74 = scmp.ne.s32.totalorder %s60, %s61
      %p75 = scmp.eq.s32.totalorder %s20, 3
      %p76 = por %p74, %p75
      %p78 = scmp.ne.s32.totalorder %s61, %s77
      %p79 = scmp.eq.s32.totalorder %s20, 0
      %p80 = por %p78, %p79
      %s81 = ssub.s32 %s21, %s33
      %s82 = ssub.s32 %s22, %s29
      %s83 = sor.u32 %s81, %s82
      %p84 = scmp.eq.s32.totalorder %s83, 0
      %s86 = sadd.s32 %s85, 1
      %s87 = scalar_select %p84, %s85, %s86
      %p90 = pneg %p84
      %p91 = scmp.eq.s32.totalorder %s14, 3
      %p92 = por %p90, %p91
      %p93 = scmp.ne.s32.totalorder %s85, %s88
      %p94 = scmp.eq.s32.totalorder %s14, 0
      %p95 = por %p93, %p94
      %p96 = scmp.ne.s32.totalorder %s85, %s88
      %p97 = scmp.eq.s32.totalorder %s19, 3
      %p98 = por %p96, %p97
      %p99 = scmp.ne.s32.totalorder %s88, %s89
      %p100 = scmp.eq.s32.totalorder %s19, 0
      %p101 = por %p99, %p100
      %p102 = scmp.ne.s32.totalorder %s88, %s89
      %p103 = scmp.eq.s32.totalorder %s20, 3
      %p104 = por %p102, %p103
      %p106 = scmp.ne.s32.totalorder %s89, %s105
      %p107 = scmp.eq.s32.totalorder %s20, 0
      %p108 = por %p106, %p107
      %s109 = ssub.s32 %s21, %s33
      %s110 = ssub.s32 %s22, %s29
      %s111 = sor.u32 %s109, %s110
      %p112 = scmp.eq.s32.totalorder %s111, 0
      %s114 = sadd.s32 %s113, 1
      %s115 = scalar_select %p112, %s113, %s114
      %p118 = pneg %p112
      %p119 = scmp.eq.s32.totalorder %s14, 3
      %p120 = por %p118, %p119
      %p121 = scmp.ne.s32.totalorder %s113, %s116
      %p122 = scmp.eq.s32.totalorder %s14, 0
      %p123 = por %p121, %p122
      %p124 = scmp.ne.s32.totalorder %s113, %s116
      %p125 = scmp.eq.s32.totalorder %s19, 3
      %p126 = por %p124, %p125
      %p127 = scmp.ne.s32.totalorder %s116, %s117
      %p128 = scmp.eq.s32.totalorder %s19, 0
      %p129 = por %p127, %p128
      %p130 = scmp.ne.s32.totalorder %s116, %s117
      %p131 = scmp.eq.s32.totalorder %s20, 3
      %p132 = por %p130, %p131
      %p134 = scmp.ne.s32.totalorder %s117, %s133
      %p135 = scmp.eq.s32.totalorder %s20, 0
      %p136 = por %p134, %p135
      %s137 = ssub.s32 %s21, %s33
      %s138 = ssub.s32 %s22, %s29
      %s139 = sor.u32 %s137, %s138
      %p140 = scmp.eq.s32.totalorder %s139, 0
      %s142 = sadd.s32 %s141, 1
      %s143 = scalar_select %p140, %s141, %s142
      %p146 = pneg %p140
      %p147 = scmp.eq.s32.totalorder %s14, 3
      %p148 = por %p146, %p147
      %p149 = scmp.ne.s32.totalorder %s141, %s144
      %p150 = scmp.eq.s32.totalorder %s14, 0
      %p151 = por %p149, %p150
      %p152 = scmp.ne.s32.totalorder %s141, %s144
      %p153 = scmp.eq.s32.totalorder %s19, 3
      %p154 = por %p152, %p153
      %p155 = scmp.ne.s32.totalorder %s144, %s145
      %p156 = scmp.eq.s32.totalorder %s19, 0
      %p157 = por %p155, %p156
      %p158 = scmp.ne.s32.totalorder %s144, %s145
      %p159 = scmp.eq.s32.totalorder %s20, 3
      %p160 = por %p158, %p159
      %p162 = scmp.ne.s32.totalorder %s145, %s161
      %p163 = scmp.eq.s32.totalorder %s20, 0
      %p164 = por %p162, %p163
      %s166 = sadd.s32 %s165, 1
      %p169 = scmp.eq.s32.totalorder %s14, 3
      %p170 = scmp.ne.s32.totalorder %s165, %s167
      %p171 = scmp.eq.s32.totalorder %s14, 0
      %p172 = por %p170, %p171
      %p173 = scmp.ne.s32.totalorder %s165, %s167
      %p174 = scmp.eq.s32.totalorder %s19, 3
      %p175 = por %p173, %p174
      %p176 = scmp.ne.s32.totalorder %s167, %s168
      %p177 = scmp.eq.s32.totalorder %s19, 0
      %p178 = por %p176, %p177
      %p179 = scmp.ne.s32.totalorder %s167, %s168
      %p180 = scmp.eq.s32.totalorder %s20, 3
      %p181 = por %p179, %p180
      %p183 = scmp.ne.s32.totalorder %s168, %s182
      %p184 = scmp.eq.s32.totalorder %s20, 0
      %p185 = por %p183, %p184
      %s187 = sadd.s32 %s186, 1
      %p190 = scmp.eq.s32.totalorder %s14, 3
      %p191 = scmp.ne.s32.totalorder %s186, %s188
      %p192 = scmp.eq.s32.totalorder %s14, 0
      %p193 = por %p191, %p192
      %p194 = scmp.ne.s32.totalorder %s186, %s188
      %p195 = scmp.eq.s32.totalorder %s19, 3
      %p196 = por %p194, %p195
      %p197 = scmp.ne.s32.totalorder %s188, %s189
      %p198 = scmp.eq.s32.totalorder %s19, 0
      %p199 = por %p197, %p198
      %p200 = scmp.ne.s32.totalorder %s188, %s189
      %p201 = scmp.eq.s32.totalorder %s20, 3
      %p202 = por %p200, %p201
      %p204 = scmp.ne.s32.totalorder %s189, %s203
      %p205 = scmp.eq.s32.totalorder %s20, 0
      %p206 = por %p204, %p205
      %s207 = ssub.s32 %s21, %s33
      %s208 = ssub.s32 %s22, %s29
      %s209 = sor.u32 %s207, %s208
      %p210 = scmp.eq.s32.totalorder %s209, 0
      %s212 = sadd.s32 %s211, 1
      %s213 = scalar_select %p210, %s211, %s212
      %p216 = pneg %p210
      %p217 = scmp.eq.s32.totalorder %s14, 3
      %p218 = por %p216, %p217
      %p219 = scmp.ne.s32.totalorder %s211, %s214
      %p220 = scmp.eq.s32.totalorder %s14, 0
      %p221 = por %p219, %p220
      %p222 = scmp.ne.s32.totalorder %s211, %s214
      %p223 = scmp.eq.s32.totalorder %s19, 3
      %p224 = por %p222, %p223
      %p225 = scmp.ne.s32.totalorder %s214, %s215
      %p226 = scmp.eq.s32.totalorder %s19, 0
      %p227 = por %p225, %p226
      %p228 = scmp.ne.s32.totalorder %s214, %s215
      %p229 = scmp.eq.s32.totalorder %s20, 3
      %p230 = por %p228, %p229
      %p232 = scmp.ne.s32.totalorder %s215, %s231
      %p233 = scmp.eq.s32.totalorder %s20, 0
      %p234 = por %p232, %p233
      %p235 = scmp.le.s32.totalorder 1, %s14
      %p236 = scmp.lt.s32.totalorder %s14, 5
      %p237 = pnand %p235, %p236
      %p238 = pneg %p237
      // Predicated region
      $region9: #{contrastive_pretext_transform.1} parent=5 // pred_check
        _
      $region10: #{contrastive_pretext_transform.1} parent=5 // pred_check_branch
        %240 = sbr.rel (%p237) target = $region12
      $region11: #{contrastive_pretext_transform.1} parent=5 // pred_region
        %s241 = ssub.s32 %s14, 1
        // Predicated region
        $region13: #{contrastive_pretext_transform.1} parent=11 // pred_check
          %p242 = pneg %p47
        $region14: #{contrastive_pretext_transform.1} parent=11 // pred_check_branch
          %244 = sbr.rel (%p242) target = $region16
        $region15: #{contrastive_pretext_transform.1} parent=11 // pred_region
          %s246 = ssub.s32 16, 16
          %247 = vsyncadd [#allocation4], %s246
          %s249 = sshll.u32 %s0, 4
          %s250 = int_to_ptr.vmem [resolvable:$true] %s249
          %252 = dma.vmem_to_smem %s250, 16, [#allocation3], [#allocation4]
        $region16: #{contrastive_pretext_transform.1} parent=11 // pred_fallthru
          _
        // Predicated region
        $region17: #{contrastive_pretext_transform.1} parent=11 // pred_check
          %p253 = pneg %p178
        $region18: #{contrastive_pretext_transform.1} parent=11 // pred_check_branch
          %255 = sbr.rel (%p253) target = $region20
        $region19: #{contrastive_pretext_transform.1} parent=11 // pred_region
          _
        $region20: #{contrastive_pretext_transform.1} parent=11 // pred_fallthru
          _
        // Predicated region
        $region21: #{contrastive_pretext_transform.1} parent=11 // pred_check
          %p256 = pneg %p199
        $region22: #{contrastive_pretext_transform.1} parent=11 // pred_check_branch
          %258 = sbr.rel (%p256) target = $region24
        $region23: #{contrastive_pretext_transform.1} parent=11 // pred_region
          _
        $region24: #{contrastive_pretext_transform.1} parent=11 // pred_fallthru
          _
      $region12: #{contrastive_pretext_transform.1} parent=5 // pred_fallthru
        _
      %p259 = scmp.lt.s32.totalorder %s14, 4
      // Predicated region
      $region25: #{contrastive_pretext_transform.1} parent=5 // pred_check
        %p260 = pneg %p259
      $region26: #{contrastive_pretext_transform.1} parent=5 // pred_check_branch
        %262 = sbr.rel (%p260) target = $region28
      $region27: #{contrastive_pretext_transform.1} parent=5 // pred_region
        // Predicated region
        $region29: #{contrastive_pretext_transform.1} parent=27 // pred_check
          %p263 = pneg %p67
        $region30: #{contrastive_pretext_transform.1} parent=27 // pred_check_branch
          %265 = sbr.rel (%p263) target = $region32
        $region31: #{contrastive_pretext_transform.1} parent=27 // pred_region
          %p266 = scmp.lt.s32.totalorder %s21, 1
          %s267 = scalar_select %p266, %s21, 1
          %s268 = smul.addr %s267, 6
          %s269 = smul.addr %s268, 4
          %s270 = scalar_lea.vmem %s1, %s269
        $region32: #{contrastive_pretext_transform.1} parent=27 // pred_fallthru
          _
        // Predicated region
        $region33: #{contrastive_pretext_transform.1} parent=27 // pred_check
          %p271 = pneg %p95
        $region34: #{contrastive_pretext_transform.1} parent=27 // pred_check_branch
          %273 = sbr.rel (%p271) target = $region36
        $region35: #{contrastive_pretext_transform.1} parent=27 // pred_region
          %p274 = scmp.lt.s32.totalorder %s21, 1
          %s275 = scalar_select %p274, %s21, 1
          %p276 = scmp.lt.s32.totalorder %s22, 1
          %s277 = scalar_select %p276, %s22, 1
          %s278 = smul.addr %s277, 2
          %s279 = smul.addr %s275, 4
          %s280 = sadd.s32 %s278, %s279
          %s281 = smul.addr %s280, 4
          %s282 = scalar_lea.vmem %s2, %s281
        $region36: #{contrastive_pretext_transform.1} parent=27 // pred_fallthru
          _
        // Predicated region
        $region37: #{contrastive_pretext_transform.1} parent=27 // pred_check
          %p283 = pneg %p123
        $region38: #{contrastive_pretext_transform.1} parent=27 // pred_check_branch
          %285 = sbr.rel (%p283) target = $region40
        $region39: #{contrastive_pretext_transform.1} parent=27 // pred_region
          %p286 = scmp.lt.s32.totalorder %s21, 1
          %s287 = scalar_select %p286, %s21, 1
          %p288 = scmp.lt.s32.totalorder %s22, 1
          %s289 = scalar_select %p288, %s22, 1
          %s290 = smul.addr %s287, 2
          %s291 = sadd.s32 %s289, %s290
          %s292 = smul.addr %s291, 4
          %s293 = scalar_lea.vmem %s3, %s292
        $region40: #{contrastive_pretext_transform.1} parent=27 // pred_fallthru
          _
        // Predicated region
        $region41: #{contrastive_pretext_transform.1} parent=27 // pred_check
          %p294 = pneg %p151
        $region42: #{contrastive_pretext_transform.1} parent=27 // pred_check_branch
          %296 = sbr.rel (%p294) target = $region44
        $region43: #{contrastive_pretext_transform.1} parent=27 // pred_region
          %p297 = scmp.lt.s32.totalorder %s21, 1
          %s298 = scalar_select %p297, %s21, 1
          %p299 = scmp.lt.s32.totalorder %s22, 1
          %s300 = scalar_select %p299, %s22, 1
          %s301 = smul.addr %s298, 2
          %s302 = sadd.s32 %s300, %s301
          %s303 = smul.addr %s302, 4
          %s304 = scalar_lea.vmem %s4, %s303
        $region44: #{contrastive_pretext_transform.1} parent=27 // pred_fallthru
          _
      $region28: #{contrastive_pretext_transform.1} parent=5 // pred_fallthru
        _
      %p305 = scmp.le.s32.totalorder 1, %s14
      %p306 = scmp.lt.s32.totalorder %s14, 5
      %p307 = pnand %p305, %p306
      %p308 = pneg %p307
      // Predicated region
      $region45: #{contrastive_pretext_transform.1} parent=5 // pred_check
        _
      $region46: #{contrastive_pretext_transform.1} parent=5 // pred_check_branch
        %310 = sbr.rel (%p307) target = $region48
      $region47: #{contrastive_pretext_transform.1} parent=5 // pred_region
        %s311 = ssub.s32 %s14, 1
        // Predicated region
        $region49: #{contrastive_pretext_transform.1} parent=47 // pred_check
          %p312 = pneg %p47
        $region50: #{contrastive_pretext_transform.1} parent=47 // pred_check_branch
          %314 = sbr.rel (%p312) target = $region52
        $region51: #{contrastive_pretext_transform.1} parent=47 // pred_region
          %315 = dma.done [#allocation4], 16
        $region52: #{contrastive_pretext_transform.1} parent=47 // pred_fallthru
          _
        %316 = sfence
        %p317 = pneg %p47
        %p318 = pneg %p44
        %p319 = scmp.lt.s32.totalorder %s23, 1
        %s320 = scalar_select %p319, %s23, 1
        %s321 = smul.addr %s320, 6
        %s322 = smul.addr %s321, 4
        %s323 = scalar_lea.vmem %s1, %s322
        %p324 = pneg %p73
        %p325 = pneg %p70
        %p326 = scmp.lt.s32.totalorder %s23, 1
        %s327 = scalar_select %p326, %s23, 1
        %p328 = scmp.lt.s32.totalorder %s24, 1
        %s329 = scalar_select %p328, %s24, 1
        %s330 = smul.addr %s329, 2
        %s331 = smul.addr %s327, 4
        %s332 = sadd.s32 %s330, %s331
        %s333 = smul.addr %s332, 4
        %s334 = scalar_lea.vmem %s2, %s333
        %p335 = pneg %p101
        %p336 = pneg %p98
        %p337 = scmp.lt.s32.totalorder %s23, 1
        %s338 = scalar_select %p337, %s23, 1
        %p339 = scmp.lt.s32.totalorder %s24, 1
        %s340 = scalar_select %p339, %s24, 1
        %s341 = smul.addr %s338, 2
        %s342 = sadd.s32 %s340, %s341
        %s343 = smul.addr %s342, 4
        %s344 = scalar_lea.vmem %s3, %s343
        %p345 = pneg %p129
        %p346 = pneg %p126
        %p347 = scmp.lt.s32.totalorder %s23, 1
        %s348 = scalar_select %p347, %s23, 1
        %p349 = scmp.lt.s32.totalorder %s24, 1
        %s350 = scalar_select %p349, %s24, 1
        %s351 = smul.addr %s348, 2
        %s352 = sadd.s32 %s350, %s351
        %s353 = smul.addr %s352, 4
        %s354 = scalar_lea.vmem %s4, %s353
        %p355 = pneg %p157
        %p356 = pneg %p154
        %p357 = pneg %p178
        %p358 = pneg %p175
        %p359 = pneg %p199
        %p360 = pneg %p196
        %p361 = pneg %p227
        %p362 = pneg %p224
        %p363 = scmp.lt.s32.totalorder %s23, 1
        %s364 = scalar_select %p363, %s23, 1
        %p365 = scmp.lt.s32.totalorder %s24, 1
        %s366 = scalar_select %p365, %s24, 1
        %s367 = smul.addr %s366, 3
        %s368 = smul.addr %s364, 6
        %s369 = sadd.s32 %s367, %s368
        %s370 = smul.addr %s369, 8
        %s371 = scalar_lea.vmem %s7, %s370
        %p372 = scmp.lt.s32.totalorder %s23, 1
        %s373 = scalar_select %p372, %s23, 1
        %s374 = smul.addr %s373, 6
        %s375 = smul.addr %s374, 4
        %s376 = scalar_lea.vmem %s1, %s375
        %p377 = scmp.lt.s32.totalorder %s23, 1
        %s378 = scalar_select %p377, %s23, 1
        %p379 = scmp.lt.s32.totalorder %s24, 1
        %s380 = scalar_select %p379, %s24, 1
        %s381 = smul.addr %s380, 2
        %s382 = smul.addr %s378, 4
        %s383 = sadd.s32 %s381, %s382
        %s384 = smul.addr %s383, 4
        %s385 = scalar_lea.vmem %s2, %s384
        %p386 = scmp.lt.s32.totalorder %s23, 1
        %s387 = scalar_select %p386, %s23, 1
        %p388 = scmp.lt.s32.totalorder %s24, 1
        %s389 = scalar_select %p388, %s24, 1
        %s390 = smul.addr %s387, 2
        %s391 = sadd.s32 %s389, %s390
        %s392 = smul.addr %s391, 4
        %s393 = scalar_lea.vmem %s3, %s392
        %p394 = scmp.lt.s32.totalorder %s23, 1
        %s395 = scalar_select %p394, %s23, 1
        %p396 = scmp.lt.s32.totalorder %s24, 1
        %s397 = scalar_select %p396, %s24, 1
        %s398 = smul.addr %s395, 2
        %s399 = sadd.s32 %s397, %s398
        %s400 = smul.addr %s399, 4
        %s401 = scalar_lea.vmem %s4, %s400
        %p402 = scmp.lt.s32.totalorder %s23, 1
        %s403 = scalar_select %p402, %s23, 1
        %p404 = scmp.lt.s32.totalorder %s24, 1
        %s405 = scalar_select %p404, %s24, 1
        %s406 = smul.addr %s405, 3
        %s407 = smul.addr %s403, 6
        %s408 = sadd.s32 %s406, %s407
        %s409 = smul.addr %s408, 8
        %s410 = scalar_lea.vmem %s7, %s409
        %s412 = smul.u32 %s23, 2
        %s413 = sadd.s32 %s412, %s24
        %s414 = smul.u32 %s413, 16
        %s415 = sld [smem:[#allocation3 + %s414]]
        %s416 = sadd.s32 %s414, 1
        %s417 = sld [smem:[#allocation3 + %s416]]
        %s418 = sadd.s32 %s414, 2
        %s419 = sld [smem:[#allocation3 + %s418]]
        %s420 = sadd.s32 %s414, 3
        %s421 = sld [smem:[#allocation3 + %s420]]
        %s422 = sadd.s32 %s414, 4
        %s423 = sld [smem:[#allocation3 + %s422]]
        %s424 = sadd.s32 %s414, 5
        %s425 = sld [smem:[#allocation3 + %s424]]
        %s426 = sadd.s32 %s414, 6
        %s427 = sld [smem:[#allocation3 + %s426]]
        %s428 = sadd.s32 %s414, 7
        %s429 = sld [smem:[#allocation3 + %s428]]
        %s430 = sadd.s32 %s414, 8
        %s431 = sld [smem:[#allocation3 + %s430]]
        %s432 = sadd.s32 %s414, 9
        %s433 = sld [smem:[#allocation3 + %s432]]
        %s434 = sadd.s32 %s414, 10
        %s435 = sld [smem:[#allocation3 + %s434]]
        %s436 = sadd.s32 %s414, 11
        %s437 = sld [smem:[#allocation3 + %s436]]
        %s438 = sadd.s32 %s414, 12
        %s439 = sld [smem:[#allocation3 + %s438]]
        %v440 = vld [vmem:[%s376] sm:$0xf]
        %v441 = vld [vmem:[%s376 + $0x4] sm:$0xf]
        %v442 = vld [vmem:[%s376 + $0x8] sm:$0xf]
        %v443 = vld [vmem:[%s376 + $0xc] sm:$0xf]
        %v444 = vld [vmem:[%s376 + $0x10] sm:$0xf]
        %v445 = vld [vmem:[%s376 + $0x14] sm:$0xf]
        %v446 = vld [vmem:[%s385] sm:$0xf]
        %v447 = vld [vmem:[%s385 + $0x4] sm:$0xf]
        %v454 = vunpack.c.l.b16 %v440
        %v455 = vunpack.c.l.b16 %v441
        %v456 = vunpack.c.l.b16 %v442
        %v457 = vunpack.c.l.b16 %v443
        %v458 = vunpack.c.l.b16 %v444
        %v459 = vunpack.c.l.b16 %v445
        %v460 = vpack.c.b16 %v455, %v454
        %v461 = vpack.c.b16 %v457, %v456
        %v462 = vpack.c.b16 %v459, %v458
        %v465 = vunpack.c.l.b16 %v446
        %v466 = vunpack.c.l.b16 %v447
        %v467 = vpack.c.b16 %v466, %v465
        %vm469 = vcmask 130048
        %v471 = vsel %vm469, %v460, 0
        %v474 = vsel %vm469, %v461, 0
        %v477 = vsel %vm469, %v462, 0
        %479 = vmatprep.subr.bf16.mxu0 0
        %480 = vmatpush1.bf16.msra.mxu0 %v467
        %481 = vmatprep.subr.bf16.mxu0 0
        %482 = vmatpush1.bf16.msra.mxu0 0
        %483 = vmatprep.subr.bf16.mxu0 0
        %484 = vmatpush1.bf16.msra.mxu0 0
        %485 = vmatprep.subr.bf16.mxu0 0
        %486 = vmatpush1.bf16.msra.mxu0 0
        %487 = vmatprep.subr.bf16.mxu0 0
        %488 = vmatpush1.bf16.msra.mxu0 0
        %489 = vmatprep.subr.bf16.mxu0 0
        %490 = vmatpush1.bf16.msra.mxu0 0
        %491 = vmatprep.subr.bf16.mxu0 0
        %492 = vmatpush1.bf16.msra.mxu0 0
        %493 = vmatprep.subr.bf16.mxu0 0
        %494 = vmatpush1.bf16.msra.mxu0 0
        %495 = vmatprep.subr.bf16.mxu0 0
        %496 = vmatpush1.bf16.msra.mxu0 0
        %497 = vmatprep.subr.bf16.mxu0 0
        %498 = vmatpush1.bf16.msra.mxu0 0
        %499 = vmatprep.subr.bf16.mxu0 0
        %500 = vmatpush1.bf16.msra.mxu0 0
        %501 = vmatprep.subr.bf16.mxu0 0
        %502 = vmatpush1.bf16.msra.mxu0 0
        %503 = vmatprep.subr.bf16.mxu0 0
        %504 = vmatpush1.bf16.msra.mxu0 0
        %505 = vmatprep.subr.bf16.mxu0 0
        %506 = vmatpush1.bf16.msra.mxu0 0
        %507 = vmatprep.subr.bf16.mxu0 0
        %508 = vmatpush1.bf16.msra.mxu0 0
        %509 = vmatprep.subr.bf16.mxu0 0
        %510 = vmatpush1.bf16.msra.mxu0 0
        %511 = vmatprep.mubr.bf16.mxu0 0
        %512 = vmatmul.mubr.bf16.gmra.mrb[0].mxu0 %v471
        %v513 = vpop.f32.mrb[0].mxu0
        %v514 = vadd.f32 0.0, %v513
        %v515 = vpop.f32.mrb[0].mxu0
        %v516 = vpop.f32.mrb[0].mxu0
        %v517 = vadd.f32 0.0, %v516
        %v518 = vpop.f32.mrb[0].mxu0
        %519 = vmatprep.mubr.bf16.mxu0 0
        %520 = vmatmul.mubr.bf16.gmra.mrb[0].mxu0 %v474
        %v521 = vpop.f32.mrb[0].mxu0
        %v522 = vadd.f32 0.0, %v521
        %v523 = vpop.f32.mrb[0].mxu0
        %v524 = vpop.f32.mrb[0].mxu0
        %v525 = vadd.f32 0.0, %v524
        %v526 = vpop.f32.mrb[0].mxu0
        %527 = vmatprep.mubr.bf16.mxu0 0
        %528 = vmatmul.mubr.bf16.gmra.mrb[0].mxu0 %v477
        %v529 = vpop.f32.mrb[0].mxu0
        %v530 = vadd.f32 0.0, %v529
        %v531 = vpop.f32.mrb[0].mxu0
        %v532 = vpop.f32.mrb[0].mxu0
        %v533 = vadd.f32 0.0, %v532
        %v534 = vpop.f32.mrb[0].mxu0
        %535 = vdwg.mxu0
        %v536 = vpack.c.bf16 %v517, %v514
        %v537 = vpack.c.bf16 %v525, %v522
        %v538 = vpack.c.bf16 %v533, %v530
        %v539 = vld [vmem:[%s393] sm:$0xf]
        %v541 = vsel %vm469, %v539, 0
        %543 = vmatprep.subr.bf16.mxu0 0
        %544 = vmatpush1.bf16.msra.mxu0 %v536
        %545 = vmatprep.subr.bf16.mxu0 0
        %546 = vmatpush1.bf16.msra.mxu0 0
        %547 = vmatprep.subr.bf16.mxu0 0
        %548 = vmatpush1.bf16.msra.mxu0 0
        %549 = vmatprep.subr.bf16.mxu0 0
        %550 = vmatpush1.bf16.msra.mxu0 0
        %551 = vmatprep.subr.bf16.mxu0 0
        %552 = vmatpush1.bf16.msra.mxu0 0
        %553 = vmatprep.subr.bf16.mxu0 0
        %554 = vmatpush1.bf16.msra.mxu0 0
        %555 = vmatprep.subr.bf16.mxu0 0
        %556 = vmatpush1.bf16.msra.mxu0 0
        %557 = vmatprep.subr.bf16.mxu0 0
        %558 = vmatpush1.bf16.msra.mxu0 0
        %559 = vmatprep.subr.bf16.mxu0 0
        %560 = vmatpush1.bf16.msra.mxu0 0
        %561 = vmatprep.subr.bf16.mxu0 0
        %562 = vmatpush1.bf16.msra.mxu0 0
        %563 = vmatprep.subr.bf16.mxu0 0
        %564 = vmatpush1.bf16.msra.mxu0 0
        %565 = vmatprep.subr.bf16.mxu0 0
        %566 = vmatpush1.bf16.msra.mxu0 0
        %567 = vmatprep.subr.bf16.mxu0 0
        %568 = vmatpush1.bf16.msra.mxu0 0
        %569 = vmatprep.subr.bf16.mxu0 0
        %570 = vmatpush1.bf16.msra.mxu0 0
        %571 = vmatprep.subr.bf16.mxu0 0
        %572 = vmatpush1.bf16.msra.mxu0 0
        %573 = vmatprep.subr.bf16.mxu0 0
        %574 = vmatpush1.bf16.msra.mxu0 0
        %575 = vmatprep.mubr.bf16.mxu0 0
        %576 = vmatmul.mubr.bf16.gmra.mrb[0].mxu0 %v541
        %v577 = vpop.f32.mrb[0].mxu0
        %v578 = vadd.f32 0.0, %v577
        %v579 = vpop.f32.mrb[0].mxu0
        %v580 = vpop.f32.mrb[0].mxu0
        %v581 = vpop.f32.mrb[0].mxu0
        %582 = vdwg.mxu0
        %583 = vmatprep.subr.bf16.mxu0 0
        %584 = vmatpush1.bf16.msra.mxu0 %v537
        %585 = vmatprep.subr.bf16.mxu0 0
        %586 = vmatpush1.bf16.msra.mxu0 0
        %587 = vmatprep.subr.bf16.mxu0 0
        %588 = vmatpush1.bf16.msra.mxu0 0
        %589 = vmatprep.subr.bf16.mxu0 0
        %590 = vmatpush1.bf16.msra.mxu0 0
        %591 = vmatprep.subr.bf16.mxu0 0
        %592 = vmatpush1.bf16.msra.mxu0 0
        %593 = vmatprep.subr.bf16.mxu0 0
        %594 = vmatpush1.bf16.msra.mxu0 0
        %595 = vmatprep.subr.bf16.mxu0 0
        %596 = vmatpush1.bf16.msra.mxu0 0
        %597 = vmatprep.subr.bf16.mxu0 0
        %598 = vmatpush1.bf16.msra.mxu0 0
        %599 = vmatprep.subr.bf16.mxu0 0
        %600 = vmatpush1.bf16.msra.mxu0 0
        %601 = vmatprep.subr.bf16.mxu0 0
        %602 = vmatpush1.bf16.msra.mxu0 0
        %603 = vmatprep.subr.bf16.mxu0 0
        %604 = vmatpush1.bf16.msra.mxu0 0
        %605 = vmatprep.subr.bf16.mxu0 0
        %606 = vmatpush1.bf16.msra.mxu0 0
        %607 = vmatprep.subr.bf16.mxu0 0
        %608 = vmatpush1.bf16.msra.mxu0 0
        %609 = vmatprep.subr.bf16.mxu0 0
        %610 = vmatpush1.bf16.msra.mxu0 0
        %611 = vmatprep.subr.bf16.mxu0 0
        %612 = vmatpush1.bf16.msra.mxu0 0
        %613 = vmatprep.subr.bf16.mxu0 0
        %614 = vmatpush1.bf16.msra.mxu0 0
        %615 = vmatprep.mubr.bf16.mxu0 0
        %616 = vmatmul.mubr.bf16.gmra.mrb[0].mxu0 %v541
        %v617 = vpop.f32.mrb[0].mxu0
        %v618 = vadd.f32 0.0, %v617
        %v619 = vpop.f32.mrb[0].mxu0
        %v620 = vpop.f32.mrb[0].mxu0
        %v621 = vpop.f32.mrb[0].mxu0
        %622 = vdwg.mxu0
        %623 = vmatprep.subr.bf16.mxu0 0
        %624 = vmatpush1.bf16.msra.mxu0 %v538
        %625 = vmatprep.subr.bf16.mxu0 0
        %626 = vmatpush1.bf16.msra.mxu0 0
        %627 = vmatprep.subr.bf16.mxu0 0
        %628 = vmatpush1.bf16.msra.mxu0 0
        %629 = vmatprep.subr.bf16.mxu0 0
        %630 = vmatpush1.bf16.msra.mxu0 0
        %631 = vmatprep.subr.bf16.mxu0 0
        %632 = vmatpush1.bf16.msra.mxu0 0
        %633 = vmatprep.subr.bf16.mxu0 0
        %634 = vmatpush1.bf16.msra.mxu0 0
        %635 = vmatprep.subr.bf16.mxu0 0
        %636 = vmatpush1.bf16.msra.mxu0 0
        %637 = vmatprep.subr.bf16.mxu0 0
        %638 = vmatpush1.bf16.msra.mxu0 0
        %639 = vmatprep.subr.bf16.mxu0 0
        %640 = vmatpush1.bf16.msra.mxu0 0
        %641 = vmatprep.subr.bf16.mxu0 0
        %642 = vmatpush1.bf16.msra.mxu0 0
        %643 = vmatprep.subr.bf16.mxu0 0
        %644 = vmatpush1.bf16.msra.mxu0 0
        %645 = vmatprep.subr.bf16.mxu0 0
        %646 = vmatpush1.bf16.msra.mxu0 0
        %647 = vmatprep.subr.bf16.mxu0 0
        %648 = vmatpush1.bf16.msra.mxu0 0
        %649 = vmatprep.subr.bf16.mxu0 0
        %650 = vmatpush1.bf16.msra.mxu0 0
        %651 = vmatprep.subr.bf16.mxu0 0
        %652 = vmatpush1.bf16.msra.mxu0 0
        %653 = vmatprep.subr.bf16.mxu0 0
        %654 = vmatpush1.bf16.msra.mxu0 0
        %655 = vmatprep.mubr.bf16.mxu0 0
        %656 = vmatmul.mubr.bf16.gmra.mrb[0].mxu0 %v541
        %v657 = vpop.f32.mrb[0].mxu0
        %v658 = vadd.f32 0.0, %v657
        %v659 = vpop.f32.mrb[0].mxu0
        %v660 = vpop.f32.mrb[0].mxu0
        %v661 = vpop.f32.mrb[0].mxu0
        %662 = vdwg.mxu0
        %v663 = vmax.f32 %v578, 0.0
        %v664 = vmax.f32 %v618, 0.0
        %v665 = vmax.f32 %v658, 0.0
        %v666 = vmin.f32 %v663, 1.0
        %v667 = vmin.f32 %v664, 1.0
        %v668 = vmin.f32 %v665, 1.0
        %v669 = vstv %s415
        %v670 = vmul.f32 %v666, %v669
        %v671 = vmul.f32 %v667, %v669
        %v672 = vmul.f32 %v668, %v669
        %v673 = vmax.f32 %v670, 0.0
        %v674 = vmax.f32 %v671, 0.0
        %v675 = vmax.f32 %v672, 0.0
        %v676 = vmin.f32 %v673, 1.0
        %v677 = vmin.f32 %v674, 1.0
        %v678 = vmin.f32 %v675, 1.0
        %v679 = vmul.f32 %v676, 0.2989
        %v680 = vmul.f32 %v677, 0.587
        %v681 = vadd.f32 %v679, %v680
        %v682 = vmul.f32 %v678, 0.114
        %v683 = vadd.f32 %v681, %v682
        %vm684 = vcmask 64512
        %v685 = vsel %vm684, %v683, 0.0
        %686 = vadd.xlane.f32.xlu0 %v685
        %v687 = vpop.xlane.xlu0 %686
        %v688 = vrot.slane %v687, 4
        %v689 = vadd.f32 %v687, %v688
        %v690 = vrot.slane %v689, 2
        %v691 = vadd.f32 %v689, %v690
        %v692 = vrot.slane %v691, 1
        %v693 = vadd.f32 %v691, %v692
        %s694 = vtos %v693
        %s695 = smul.f32 %s694, 0.015625
        %v696 = vstv %s417
        %v697 = vmul.f32 %v696, %v676
        %v698 = vmul.f32 %v696, %v677
        %v699 = vmul.f32 %v696, %v678
        %s700 = ssub.f32 1.0, %s417
        %s701 = smul.f32 %s700, %s695
        %v702 = vstv %s701
        %v703 = vadd.f32 %v697, %v702
        %v704 = vadd.f32 %v698, %v702
        %v705 = vadd.f32 %v699, %v702
        %v706 = vmax.f32 %v703, 0.0
        %v707 = vmax.f32 %v704, 0.0
        %v708 = vmax.f32 %v705, 0.0
        %v709 = vmin.f32 %v706, 1.0
        %v710 = vmin.f32 %v707, 1.0
        %v711 = vmin.f32 %v708, 1.0
        %v712 = vstv %s419
        %v713 = vmul.f32 %v712, %v709
        %v714 = vstv %s421
        %v715 = vmul.f32 %v714, %v710
        %v716 = vadd.f32 %v713, %v715
        %v717 = vstv %s423
        %v718 = vmul.f32 %v717, %v711
        %v719 = vadd.f32 %v716, %v718
        %v720 = vmax.f32 %v719, 0.0
        %v721 = vmin.f32 %v720, 1.0
        %v722 = vstv %s425
        %v723 = vmul.f32 %v722, %v709
        %v724 = vstv %s427
        %v725 = vmul.f32 %v724, %v710
        %v726 = vadd.f32 %v723, %v725
        %v727 = vstv %s429
        %v728 = vmul.f32 %v727, %v711
        %v729 = vadd.f32 %v726, %v728
        %v730 = vmax.f32 %v729, 0.0
        %v731 = vmin.f32 %v730, 1.0
        %v732 = vstv %s431
        %v733 = vmul.f32 %v732, %v709
        %v734 = vstv %s433
        %v735 = vmul.f32 %v734, %v710
        %v736 = vadd.f32 %v733, %v735
        %v737 = vstv %s435
        %v738 = vmul.f32 %v737, %v711
        %v739 = vadd.f32 %v736, %v738
        %v740 = vmax.f32 %v739, 0.0
        %v741 = vmin.f32 %v740, 1.0
        %p742 = scmp.gt.f32.partialorder %s437, 0.5
        // Predicated region
        $region53: #{contrastive_pretext_transform.1} parent=47 // pred_check
          %p743 = pneg %p742
        $region54: #{contrastive_pretext_transform.1} parent=47 // pred_check_branch
          %745 = sbr.rel (%p743) target = $region56
        $region55: #{contrastive_pretext_transform.1} parent=47 // pred_region
          %v746 = vld [vmem:[%s401] sm:$0xf]
          %v747 = vpack.c.bf16 %v731, %v721
          %v748 = vpack.c.bf16 %v741, %v741
          %v750 = vsel %vm684, %v747, 0
          %v753 = vsel %vm684, %v748, 0
          %v756 = vsel %vm684, %v746, 0
          %758 = vmatprep.subr.bf16.mxu0 0
          %759 = vmatpush1.bf16.xpose.msra.mxu0 %v756
          %760 = vmatprep.subr.bf16.mxu0 0
          %761 = vmatpush1.bf16.xpose.msra.mxu0 0
          %762 = vmatprep.subr.bf16.mxu0 0
          %763 = vmatpush1.bf16.xpose.msra.mxu0 0
          %764 = vmatprep.subr.bf16.mxu0 0
          %765 = vmatpush1.bf16.xpose.msra.mxu0 0
          %766 = vmatprep.subr.bf16.mxu0 0
          %767 = vmatpush1.bf16.xpose.msra.mxu0 0
          %768 = vmatprep.subr.bf16.mxu0 0
          %769 = vmatpush1.bf16.xpose.msra.mxu0 0
          %770 = vmatprep.subr.bf16.mxu0 0
          %771 = vmatpush1.bf16.xpose.msra.mxu0 0
          %772 = vmatprep.subr.bf16.mxu0 0
          %773 = vmatpush1.bf16.xpose.msra.mxu0 0
          %774 = vmatprep.subr.bf16.mxu0 0
          %775 = vmatpush1.bf16.xpose.msra.mxu0 0
          %776 = vmatprep.subr.bf16.mxu0 0
          %777 = vmatpush1.bf16.xpose.msra.mxu0 0
          %778 = vmatprep.subr.bf16.mxu0 0
          %779 = vmatpush1.bf16.xpose.msra.mxu0 0
          %780 = vmatprep.subr.bf16.mxu0 0
          %781 = vmatpush1.bf16.xpose.msra.mxu0 0
          %782 = vmatprep.subr.bf16.mxu0 0
          %783 = vmatpush1.bf16.xpose.msra.mxu0 0
          %784 = vmatprep.subr.bf16.mxu0 0
          %785 = vmatpush1.bf16.xpose.msra.mxu0 0
          %786 = vmatprep.subr.bf16.mxu0 0
          %787 = vmatpush1.bf16.xpose.msra.mxu0 0
          %788 = vmatprep.subr.bf16.mxu0 0
          %789 = vmatpush1.bf16.xpose.msra.mxu0 0
          %790 = vmatprep.mubr.bf16.mxu0 0
          %791 = vmatmul.mubr.bf16.gmra.mrb[0].mxu0 %v750
          %v792 = vpop.f32.mrb[0].mxu0
          %v793 = vadd.f32 0.0, %v792
          %v794 = vpop.f32.mrb[0].mxu0
          %v795 = vpop.f32.mrb[0].mxu0
          %v796 = vadd.f32 0.0, %v795
          %v797 = vpop.f32.mrb[0].mxu0
          %798 = vmatprep.mubr.bf16.mxu0 0
          %799 = vmatmul.mubr.bf16.gmra.mrb[0].mxu0 %v753
          %v800 = vpop.f32.mrb[0].mxu0
          %v801 = vadd.f32 0.0, %v800
          %v802 = vpop.f32.mrb[0].mxu0
          %v803 = vpop.f32.mrb[0].mxu0
          %v804 = vpop.f32.mrb[0].mxu0
          %805 = vdwg.mxu0
          %v806 = vpack.c.bf16 %v796, %v793
          %v807 = vpack.c.bf16 %v801, %v801
          %vm808 = vcmask 1043456
          %v810 = vsel %vm808, %v806, 0
          %812 = vmatprep.subr.bf16.mxu0 0
          %813 = vmatpush1.bf16.msra.mxu0 %v810
          %814 = vmatprep.subr.bf16.mxu0 0
          %815 = vmatpush1.bf16.msra.mxu0 0
          %816 = vmatprep.subr.bf16.mxu0 0
          %817 = vmatpush1.bf16.msra.mxu0 0
          %818 = vmatprep.subr.bf16.mxu0 0
          %819 = vmatpush1.bf16.msra.mxu0 0
          %820 = vmatprep.subr.bf16.mxu0 0
          %821 = vmatpush1.bf16.msra.mxu0 0
          %822 = vmatprep.subr.bf16.mxu0 0
          %823 = vmatpush1.bf16.msra.mxu0 0
          %824 = vmatprep.subr.bf16.mxu0 0
          %825 = vmatpush1.bf16.msra.mxu0 0
          %826 = vmatprep.subr.bf16.mxu0 0
          %827 = vmatpush1.bf16.msra.mxu0 0
          %828 = vmatprep.subr.bf16.mxu0 0
          %829 = vmatpush1.bf16.msra.mxu0 0
          %830 = vmatprep.subr.bf16.mxu0 0
          %831 = vmatpush1.bf16.msra.mxu0 0
          %832 = vmatprep.subr.bf16.mxu0 0
          %833 = vmatpush1.bf16.msra.mxu0 0
          %834 = vmatprep.subr.bf16.mxu0 0
          %835 = vmatpush1.bf16.msra.mxu0 0
          %836 = vmatprep.subr.bf16.mxu0 0
          %837 = vmatpush1.bf16.msra.mxu0 0
          %838 = vmatprep.subr.bf16.mxu0 0
          %839 = vmatpush1.bf16.msra.mxu0 0
          %840 = vmatprep.subr.bf16.mxu0 0
          %841 = vmatpush1.bf16.msra.mxu0 0
          %842 = vmatprep.subr.bf16.mxu0 0
          %843 = vmatpush1.bf16.msra.mxu0 0
          %844 = vmatprep.mubr.bf16.mxu0 0
          %845 = vmatmul.mubr.bf16.gmra.mrb[0].mxu0 %v756
          %v846 = vpop.f32.mrb[0].mxu0
          %v847 = vadd.f32 0.0, %v846
          %v848 = vpop.f32.mrb[0].mxu0
          %v849 = vpop.f32.mrb[0].mxu0
          %v850 = vpop.f32.mrb[0].mxu0
          %851 = vdwg.mxu0
          %v853 = vrot.slane %v806, 4
          %v855 = vsel %vm808, %v853, 0
          %857 = vmatprep.subr.bf16.mxu0 0
          %858 = vmatpush1.bf16.msra.mxu0 %v855
          %859 = vmatprep.subr.bf16.mxu0 0
          %860 = vmatpush1.bf16.msra.mxu0 0
          %861 = vmatprep.subr.bf16.mxu0 0
          %862 = vmatpush1.bf16.msra.mxu0 0
          %863 = vmatprep.subr.bf16.mxu0 0
          %864 = vmatpush1.bf16.msra.mxu0 0
          %865 = vmatprep.subr.bf16.mxu0 0
          %866 = vmatpush1.bf16.msra.mxu0 0
          %867 = vmatprep.subr.bf16.mxu0 0
          %868 = vmatpush1.bf16.msra.mxu0 0
          %869 = vmatprep.subr.bf16.mxu0 0
          %870 = vmatpush1.bf16.msra.mxu0 0
          %871 = vmatprep.subr.bf16.mxu0 0
          %872 = vmatpush1.bf16.msra.mxu0 0
          %873 = vmatprep.subr.bf16.mxu0 0
          %874 = vmatpush1.bf16.msra.mxu0 0
          %875 = vmatprep.subr.bf16.mxu0 0
          %876 = vmatpush1.bf16.msra.mxu0 0
          %877 = vmatprep.subr.bf16.mxu0 0
          %878 = vmatpush1.bf16.msra.mxu0 0
          %879 = vmatprep.subr.bf16.mxu0 0
          %880 = vmatpush1.bf16.msra.mxu0 0
          %881 = vmatprep.subr.bf16.mxu0 0
          %882 = vmatpush1.bf16.msra.mxu0 0
          %883 = vmatprep.subr.bf16.mxu0 0
          %884 = vmatpush1.bf16.msra.mxu0 0
          %885 = vmatprep.subr.bf16.mxu0 0
          %886 = vmatpush1.bf16.msra.mxu0 0
          %887 = vmatprep.subr.bf16.mxu0 0
          %888 = vmatpush1.bf16.msra.mxu0 0
          %889 = vmatprep.mubr.bf16.mxu0 0
          %890 = vmatmul.mubr.bf16.gmra.mrb[0].mxu0 %v756
          %v891 = vpop.f32.mrb[0].mxu0
          %v892 = vadd.f32 0.0, %v891
          %v893 = vpop.f32.mrb[0].mxu0
          %v894 = vpop.f32.mrb[0].mxu0
          %v895 = vpop.f32.mrb[0].mxu0
          %896 = vdwg.mxu0
          %v898 = vsel %vm808, %v807, 0
          %900 = vmatprep.subr.bf16.mxu0 0
          %901 = vmatpush1.bf16.msra.mxu0 %v898
          %902 = vmatprep.subr.bf16.mxu0 0
          %903 = vmatpush1.bf16.msra.mxu0 0
          %904 = vmatprep.subr.bf16.mxu0 0
          %905 = vmatpush1.bf16.msra.mxu0 0
          %906 = vmatprep.subr.bf16.mxu0 0
          %907 = vmatpush1.bf16.msra.mxu0 0
          %908 = vmatprep.subr.bf16.mxu0 0
          %909 = vmatpush1.bf16.msra.mxu0 0
          %910 = vmatprep.subr.bf16.mxu0 0
          %911 = vmatpush1.bf16.msra.mxu0 0
          %912 = vmatprep.subr.bf16.mxu0 0
          %913 = vmatpush1.bf16.msra.mxu0 0
          %914 = vmatprep.subr.bf16.mxu0 0
          %915 = vmatpush1.bf16.msra.mxu0 0
          %916 = vmatprep.subr.bf16.mxu0 0
          %917 = vmatpush1.bf16.msra.mxu0 0
          %918 = vmatprep.subr.bf16.mxu0 0
          %919 = vmatpush1.bf16.msra.mxu0 0
          %920 = vmatprep.subr.bf16.mxu0 0
          %921 = vmatpush1.bf16.msra.mxu0 0
          %922 = vmatprep.subr.bf16.mxu0 0
          %923 = vmatpush1.bf16.msra.mxu0 0
          %924 = vmatprep.subr.bf16.mxu0 0
          %925 = vmatpush1.bf16.msra.mxu0 0
          %926 = vmatprep.subr.bf16.mxu0 0
          %927 = vmatpush1.bf16.msra.mxu0 0
          %928 = vmatprep.subr.bf16.mxu0 0
          %929 = vmatpush1.bf16.msra.mxu0 0
          %930 = vmatprep.subr.bf16.mxu0 0
          %931 = vmatpush1.bf16.msra.mxu0 0
          %932 = vmatprep.mubr.bf16.mxu0 0
          %933 = vmatmul.mubr.bf16.gmra.mrb[0].mxu0 %v756
          %v934 = vpop.f32.mrb[0].mxu0
          %v935 = vadd.f32 0.0, %v934
          %v936 = vpop.f32.mrb[0].mxu0
          %v937 = vpop.f32.mrb[0].mxu0
          %v938 = vpop.f32.mrb[0].mxu0
          %939 = vdwg.mxu0
          %940 = vst.msk [vmem:[#allocation2] sm:$0xff] %vm684, %v847
          %941 = vst.msk [vmem:[#allocation2 + $0x8] sm:$0xff] %vm684, %v892
          %942 = vst.msk [vmem:[#allocation2 + $0x10] sm:$0xff] %vm684, %v935
        $region56: #{contrastive_pretext_transform.1} parent=47 // pred_fallthru
          _
        %v943 = vld [vmem:[#allocation2] sm:$0xff]
        %v944 = vld [vmem:[#allocation2 + $0x8] sm:$0xff]
        %v945 = vld [vmem:[#allocation2 + $0x10] sm:$0xff]
        %s946 = scalar_select %p742, 1, 0
        %v947 = vstv %s946
        %vm948 = vcmp.eq.s32.totalorder %v947, 1
        %v949 = vsel %vm948, %v943, %v721
        %v950 = vsel %vm948, %v944, %v731
        %v951 = vsel %vm948, %v945, %v741
        %p952 = scmp.gt.f32.partialorder %s439, 0.5
        %vm953 = vcmp.ge.f32.partialorder %v949, 0.5019608
        %vm954 = vcmp.ge.f32.partialorder %v950, 0.5019608
        %vm955 = vcmp.ge.f32.partialorder %v951, 0.5019608
        %s956 = scalar_select %p952, 1, 0
        %v957 = vstv %s956
        %vm958 = vcmp.eq.s32.totalorder %v957, 1
        %vm959 = vmand %vm958, %vm953
        %vm960 = vmand %vm958, %vm954
        %vm961 = vmand %vm958, %vm955
        %v962 = vsub.f32 1.0, %v949
        %v963 = vsub.f32 1.0, %v950
        %v964 = vsub.f32 1.0, %v951
        %v965 = vsel %vm959, %v962, %v949
        %v966 = vsel %vm960, %v963, %v950
        %v967 = vsel %vm961, %v964, %v951
        %v968 = vld [vmem:[%s5] sm:$0xff]
        %v969 = vld [vmem:[%s5 + $0x8] sm:$0xff]
        %v970 = vld [vmem:[%s5 + $0x10] sm:$0xff]
        %972 = vset.pattern.permute.xlu0 0
        %973 = vperm.xlu0 %972, %v968
        %v974 = vpop.permute.xlu0 %973
        %977 = vset.pattern.permute.xlu0 0
        %978 = vperm.xlu0 %977, %v969
        %v979 = vpop.permute.xlu0 %978
        %982 = vset.pattern.permute.xlu0 0
        %983 = vperm.xlu0 %982, %v970
        %v984 = vpop.permute.xlu0 %983
        %v986 = vmul.f32 %v965, %v974
        %v987 = vmul.f32 %v966, %v979
        %v988 = vmul.f32 %v967, %v984
        %v989 = vld [vmem:[%s6] sm:$0xff]
        %v990 = vld [vmem:[%s6 + $0x8] sm:$0xff]
        %v991 = vld [vmem:[%s6 + $0x10] sm:$0xff]
        %993 = vset.pattern.permute.xlu0 0
        %994 = vperm.xlu0 %993, %v989
        %v995 = vpop.permute.xlu0 %994
        %998 = vset.pattern.permute.xlu0 0
        %999 = vperm.xlu0 %998, %v990
        %v1000 = vpop.permute.xlu0 %999
        %1003 = vset.pattern.permute.xlu0 0
        %1004 = vperm.xlu0 %1003, %v991
        %v1005 = vpop.permute.xlu0 %1004
        %v1007 = vadd.f32 %v986, %v995
        %v1008 = vadd.f32 %v987, %v1000
        %v1009 = vadd.f32 %v988, %v1005
        %1010 = vst.msk [vmem:[%s410] sm:$0xff] %vm684, %v1007
        %1011 = vst.msk [vmem:[%s410 + $0x8] sm:$0xff] %vm684, %v1008
        %1012 = vst.msk [vmem:[%s410 + $0x10] sm:$0xff] %vm684, %v1009
        %p1013 = scmp.lt.s32.totalorder %s23, 1
        %s1014 = scalar_select %p1013, %s23, 1
        %p1015 = scmp.lt.s32.totalorder %s24, 1
        %s1016 = scalar_select %p1015, %s24, 1
        %s1017 = smul.addr %s1016, 3
        %s1018 = smul.addr %s1014, 6
        %s1019 = sadd.s32 %s1017, %s1018
        %s1020 = smul.addr %s1019, 8
        %s1021 = scalar_lea.vmem %s7, %s1020
        // Predicated region
        $region57: #{contrastive_pretext_transform.1} parent=47 // pred_check
          %p1022 = pneg %p224
        $region58: #{contrastive_pretext_transform.1} parent=47 // pred_check_branch
          %1024 = sbr.rel (%p1022) target = $region60
        $region59: #{contrastive_pretext_transform.1} parent=47 // pred_region
          _
        $region60: #{contrastive_pretext_transform.1} parent=47 // pred_fallthru
          _
      $region48: #{contrastive_pretext_transform.1} parent=5 // pred_fallthru
        _
      %p1025 = scmp.le.s32.totalorder 2, %s14
      // Predicated region
      $region61: #{contrastive_pretext_transform.1} parent=5 // pred_check
        %p1026 = pneg %p1025
      $region62: #{contrastive_pretext_transform.1} parent=5 // pred_check_branch
        %1028 = sbr.rel (%p1026) target = $region64
      $region63: #{contrastive_pretext_transform.1} parent=5 // pred_region
        %s1029 = ssub.s32 %s14, 2
        // Predicated region
        $region65: #{contrastive_pretext_transform.1} parent=63 // pred_check
          %p1030 = pneg %p230
        $region66: #{contrastive_pretext_transform.1} parent=63 // pred_check_branch
          %1032 = sbr.rel (%p1030) target = $region68
        $region67: #{contrastive_pretext_transform.1} parent=63 // pred_region
          %p1033 = scmp.lt.s32.totalorder %s25, 1
          %s1034 = scalar_select %p1033, %s25, 1
          %p1035 = scmp.lt.s32.totalorder %s26, 1
          %s1036 = scalar_select %p1035, %s26, 1
          %s1037 = smul.addr %s1036, 3
          %s1038 = smul.addr %s1034, 6
          %s1039 = sadd.s32 %s1037, %s1038
          %s1040 = smul.addr %s1039, 8
          %s1041 = scalar_lea.vmem %s7, %s1040
        $region68: #{contrastive_pretext_transform.1} parent=63 // pred_fallthru
          _
      $region64: #{contrastive_pretext_transform.1} parent=5 // pred_fallthru
        _
    $region6: #{contrastive_pretext_transform.1} parent=1 // loop_footer
      %s18 = sadd.s32 1, %s14
    $region7: #{contrastive_pretext_transform.1} parent=1 // loop_footer_branch
      %13 = sbr.rel target = $region3
    $region8: #{contrastive_pretext_transform.1} parent=1 // loop_exit
      _
    %1042 = vsyncpa [#allocation4], 1
    %s1043 = scalar_lea.sflag [#allocation4], 1
    %1044 = vsyncpa %s1043, 1

</llo_original>
